<compile_context>
chip_gen: v7x
topology: tpu7x:2x2x1
jax: 0.10.0
libtpu: 0.0.40
codegen_flags: <defaults>
</compile_context>

<pallas_src>
import functools

import jax
import jax.numpy as jnp
import numpy as np
from jax.experimental import pallas as pl
from jax.experimental.pallas import tpu as pltpu  # noqa: F401  (TPU tuning hooks)


# ----------------------------- in-kernel helpers -----------------------------

def _layernorm(x, gamma, beta, eps=1e-5):
    """x: (M, E), gamma/beta: (1, E). PyTorch LayerNorm over last dim."""
    mean = jnp.mean(x, axis=-1, keepdims=True)
    var = jnp.mean((x - mean) ** 2, axis=-1, keepdims=True)
    return (x - mean) * jax.lax.rsqrt(var + eps) * gamma + beta


# --------------------------------- kernel ------------------------------------

def fused_transformer_kernel(seq_ref, add_ref, mask_ref, we_ref, w_ref, vec_ref,
                             wp_ref, bp_ref, out_ref, *, n_layer):
    """Whole forward pass in one kernel (no grid), everything VMEM-resident.

    seq_ref : (P, Fin)       flattened token features
    add_ref : (P, E)         positional embedding (tiled over batch) + embed bias
    mask_ref: (P, P)         block-diagonal causal 1/(i+1) averaging mask
    we_ref  : (Fin, E)       embed_transition weight, pre-transposed
    w_ref   : (L, 4, E, E)   per layer: [Wq^T@Wk, Wv^T, W1^T, W2^T]
    vec_ref : (L, 6, 1, E)   per layer: [b1, b2, ln1_g, ln1_b, ln2_g, ln2_b]
    wp_ref  : (E, A_pad)     pred_actions weight, pre-transposed + lane-padded
    bp_ref  : (1, A_pad)     pred_actions bias, lane-padded
    out_ref : (P//2, A_pad)  predictions at even token positions
    """
    P = seq_ref.shape[0]

    # 1) input embedding + (positional embedding + embed bias)
    H = jnp.dot(seq_ref[...], we_ref[...],
                preferred_element_type=jnp.float32) + add_ref[...]

    mask = mask_ref[...]

    # 2) decoder layers, unrolled (all weights resident in VMEM)
    for l in range(n_layer):
        # attention scores: (H Wq^T)(H Wk^T)^T == (H @ (Wq^T Wk)) @ H^T
        qk = jnp.dot(H, w_ref[l, 0], preferred_element_type=jnp.float32)
        scores = jax.lax.dot_general(qk, H, (((1,), (1,)), ((), ())),
                                     preferred_element_type=jnp.float32)
        attn = jnp.maximum(scores, 0.0) * mask            # ReLU attention * mask
        v = jnp.dot(H, w_ref[l, 1], preferred_element_type=jnp.float32)
        H = H + jnp.dot(attn, v, preferred_element_type=jnp.float32)

        H = _layernorm(H, vec_ref[l, 2], vec_ref[l, 3])   # ln1

        m = jnp.maximum(jnp.dot(H, w_ref[l, 2], preferred_element_type=jnp.float32)
                        + vec_ref[l, 0], 0.0)             # MLP: Linear-ReLU-Linear
        m = jnp.dot(m, w_ref[l, 3], preferred_element_type=jnp.float32) + vec_ref[l, 1]
        H = _layernorm(H + m, vec_ref[l, 4], vec_ref[l, 5])   # ln2

    # 3) prediction head only on even token rows (test=False output positions):
    #    select rows 0,2,4,... with a tiny 0/1 matmul, then a lane-dense head
    #    matmul into the (P//2, 128) output slab (unmasked stores).
    r = jax.lax.broadcasted_iota(jnp.int32, (P // 2, P), 0)
    c = jax.lax.broadcasted_iota(jnp.int32, (P // 2, P), 1)
    sel = jnp.where(c == 2 * r, 1.0, 0.0).astype(jnp.float32)
    H_even = jnp.dot(sel, H, preferred_element_type=jnp.float32)
    out_ref[...] = (jnp.dot(H_even, wp_ref[...], preferred_element_type=jnp.float32)
                    + bp_ref[...])


# ------------------------------ host-side model -------------------------------

def init_params(key, cfg):
    """Canonical PyTorch-layout parameters (used by the reference)."""
    E = cfg['n_embd']
    L = cfg['n_layer']
    A = cfg['action_dim']
    fin = 3 + cfg['dim'] * cfg['act_num'] + A
    n_pos = 4 * (1 + cfg['horizon'])

    ks = iter(jax.random.split(key, 32))

    def nrm(shape, std=0.02):
        return (std * jax.random.normal(next(ks), shape)).astype(jnp.float32)

    return dict(
        W_embed=nrm((E, fin)),                      # (out, in)
        b_embed=nrm((1, E)),
        wpe=nrm((n_pos, E)),                        # positional embedding table
        Wq=nrm((L, E, E)), Wk=nrm((L, E, E)), Wv=nrm((L, E, E)),
        ln1_g=jnp.ones((L, 1, E), jnp.float32),
        ln1_b=jnp.zeros((L, 1, E), jnp.float32),
        W1=nrm((L, E, E)), b1=nrm((L, 1, E)),
        W2=nrm((L, E, E)), b2=nrm((L, 1, E)),
        ln2_g=jnp.ones((L, 1, E), jnp.float32),
        ln2_b=jnp.zeros((L, 1, E), jnp.float32),
        W_pred=nrm((A, E)),
        b_pred=nrm((1, A)),
    )


def pack_params(params, cfg):
    """One-time host-side packing: pre-transpose to (in,out), fold Wq^T@Wk,
    stack per-layer matrices/vectors, zero-pad the head to 128 lanes."""
    E = cfg['n_embd']
    A = cfg['action_dim']
    A_pad = ((A + 127) // 128) * 128

    # Wqk[l] = Wq[l]^T @ Wk[l]  (exact f32: scores = (H @ Wqk) @ H^T)
    wqk = jnp.einsum('lod,loe->lde', params['Wq'], params['Wk'],
                     precision=jax.lax.Precision.HIGHEST)
    wv_t = jnp.transpose(params['Wv'], (0, 2, 1))
    w1_t = jnp.transpose(params['W1'], (0, 2, 1))
    w2_t = jnp.transpose(params['W2'], (0, 2, 1))
    wstack = jnp.stack([wqk, wv_t, w1_t, w2_t], axis=1)          # (L, 4, E, E)

    vecs = jnp.stack([params['b1'], params['b2'],
                      params['ln1_g'], params['ln1_b'],
                      params['ln2_g'], params['ln2_b']], axis=1)  # (L, 6, 1, E)

    wp_t = jnp.zeros((E, A_pad), jnp.float32).at[:, :A].set(params['W_pred'].T)
    bp = jnp.zeros((1, A_pad), jnp.float32).at[:, :A].set(params['b_pred'])

    return dict(
        W_embed_T=params['W_embed'].T,     # (Fin, E)
        b_embed=params['b_embed'],         # (1, E)
        wpe=params['wpe'],                 # (n_pos, E)
        wstack=wstack, vecs=vecs,
        W_pred_T=wp_t, b_pred=bp,
    )


def build_seq(action_set, context_actions, context_rewards):
    """Reproduces the sequence construction of Transformer.forward (test=False)."""
    B = action_set.shape[0]
    h = context_actions.shape[1]
    a0 = action_set.reshape(B, 1, -1)                                  # (B,1,act_num*dim)
    pair = jnp.concatenate([a0, jnp.zeros_like(a0)], axis=1)           # (B,2,D0)
    action_set_seq = jnp.tile(pair, (1, h, 1))                         # (B,2h,D0)
    act_rew = jnp.concatenate([context_actions, context_rewards], axis=2)  # (B,h,A+1)
    action_seq = jnp.zeros((B, 2 * h, act_rew.shape[2]), jnp.float32)
    action_seq = action_seq.at[:, 1::2, :].set(act_rew)
    one_seq = jnp.ones((B, 2 * h, 1), jnp.float32)
    pos_seq = jnp.tile(jnp.arange(1, 2 * h + 1, dtype=jnp.float32).reshape(1, -1, 1),
                       (B, 1, 1))
    return jnp.concatenate([action_set_seq, action_seq, one_seq, pos_seq], axis=2)


def build_mask(N):
    i = jnp.arange(N, dtype=jnp.float32)[:, None]
    j = jnp.arange(N, dtype=jnp.float32)[None, :]
    return jnp.where(j <= i, 1.0 / (i + 1.0), 0.0).astype(jnp.float32)


def make_forward(cfg):
    E = cfg['n_embd']
    L = cfg['n_layer']
    A = cfg['action_dim']
    A_pad = ((A + 127) // 128) * 128

    @jax.jit
    def forward(packed, action_set, context_actions, context_rewards):
        # query_states is declared in the PyTorch forward but never used afterwards.
        seq = build_seq(action_set, context_actions, context_rewards)
        B, N, Fin = seq.shape
        P = B * N

        seq2d = seq.reshape(P, Fin)                                    # flat tokens
        # positional embedding tiled over batch + embed bias folded in
        addin = jnp.tile(packed['wpe'][:N], (B, 1)) + packed['b_embed']
        # block-diagonal causal 1/(i+1) averaging mask over flat tokens
        # (pure function of static B, N -> constant-folded by XLA under jit)
        mask = jnp.kron(jnp.eye(B, dtype=jnp.float32), build_mask(N))

        kernel = functools.partial(fused_transformer_kernel, n_layer=L)

        # Single fused pallas_call, no grid: every operand is one whole-array
        # VMEM block (total resident footprint ~0.2 MB, far below VMEM on
        # v5e/v6e/v7x).
        out = pl.pallas_call(
            kernel,
            out_shape=jax.ShapeDtypeStruct((P // 2, A_pad), jnp.float32),
        )(seq2d, addin, mask, packed['W_embed_T'], packed['wstack'],
          packed['vecs'], packed['W_pred_T'], packed['b_pred'])

        # Rows are already restricted to even token positions inside the
        # kernel; just un-flatten and drop the lane padding.
        return out.reshape(B, N // 2, A_pad)[:, :, :A]

    return forward


# --------------------------- pure-JAX reference check --------------------------

def transformer_reference(params, x, cfg):
    seq = build_seq(x['action_set'], x['context_actions'], x['context_rewards'])
    B, N, _ = seq.shape
    H = seq @ params['W_embed'].T + params['b_embed'] + params['wpe'][:N][None]
    mask = build_mask(N)[None]

    def ln(h, g, b, eps=1e-5):
        mu = h.mean(-1, keepdims=True)
        var = ((h - mu) ** 2).mean(-1, keepdims=True)
        return (h - mu) / jnp.sqrt(var + eps) * g + b

    for l in range(cfg['n_layer']):
        q = H @ params['Wq'][l].T
        k = H @ params['Wk'][l].T
        v = H @ params['Wv'][l].T
        attn = jnp.maximum(jnp.einsum('bid,bjd->bij', q, k), 0.0) * mask
        H = H + jnp.einsum('bij,bjd->bid', attn, v)
        H = ln(H, params['ln1_g'][l], params['ln1_b'][l])
        m = jnp.maximum(H @ params['W1'][l].T + params['b1'][l], 0.0)
        m = m @ params['W2'][l].T + params['b2'][l]
        H = ln(H + m, params['ln2_g'][l], params['ln2_b'][l])
    preds = H @ params['W_pred'].T + params['b_pred']
    return preds[:, 0::2, :]


# ----------------------------------- main --------------------------------------

if __name__ == "__main__":
    cfg = dict(test=False, horizon=4, n_embd=32, n_layer=2, n_head=2,
               state_dim=5, action_dim=4, dropout=0.0, act_num=2, dim=3,
               act_type='relu')

    key = jax.random.PRNGKey(0)
    kp, k1, k2, k3, k4 = jax.random.split(key, 5)
    params = init_params(kp, cfg)
    packed = pack_params(params, cfg)          # one-time weight packing (hoisted)
    forward = make_forward(cfg)                # jitted wrapper, cfg static

    B = 2
    h = cfg['horizon']
    x = dict(
        query_states=jax.random.normal(k1, (B, cfg['state_dim']), jnp.float32),   # unused
        action_set=jax.random.normal(k2, (B, cfg['act_num'], cfg['dim']), jnp.float32),
        context_actions=jax.random.normal(k3, (B, h, cfg['action_dim']), jnp.float32),
        context_rewards=jax.random.normal(k4, (B, h, 1), jnp.float32),
    )

    out = forward(packed, x['action_set'], x['context_actions'], x['context_rewards'])
    out = jax.block_until_ready(out)

    # Reference in full f32 matmul precision so it is comparable with the f32
    # MXU accumulation inside the Pallas kernel.
    with jax.default_matmul_precision("highest"):
        ref = transformer_reference(params, x, cfg)
        ref = jax.block_until_ready(ref)

    assert out.shape == (B, h, cfg['action_dim'])
    np.testing.assert_allclose(np.asarray(out), np.asarray(ref), rtol=2e-4, atol=2e-4)

    print("KERNEL_OK")
</pallas_src>

<mosaic_0001>
module attributes {stable_mosaic.version = 11 : i64} {
  func.func @fused_transformer_kernel(%arg0: memref<16x13xf32, #tpu.memory_space<vmem>>, %arg1: memref<16x32xf32, #tpu.memory_space<vmem>>, %arg2: memref<16x16xf32, #tpu.memory_space<vmem>>, %arg3: memref<13x32xf32, #tpu.memory_space<vmem>>, %arg4: memref<2x4x32x32xf32, #tpu.memory_space<vmem>>, %arg5: memref<2x6x1x32xf32, #tpu.memory_space<vmem>>, %arg6: memref<32x128xf32, #tpu.memory_space<vmem>>, %arg7: memref<1x128xf32, #tpu.memory_space<vmem>>, %arg8: memref<8x128xf32, #tpu.memory_space<vmem>>) attributes {dimension_semantics = [], scalar_prefetch = 0 : i64, scratch_operands = 0 : i64, tpu.core_type = #tpu.core_type<tc>} {
    %c0 = arith.constant 0 : index
    %c0_0 = arith.constant 0 : index
    %0 = vector.load %arg0[%c0, %c0_0] : memref<16x13xf32, #tpu.memory_space<vmem>>, vector<16x13xf32>
    %c0_1 = arith.constant 0 : index
    %c0_2 = arith.constant 0 : index
    %1 = vector.load %arg3[%c0_1, %c0_2] : memref<13x32xf32, #tpu.memory_space<vmem>>, vector<13x32xf32>
    %cst = arith.constant dense<0.000000e+00> : vector<16x32xf32>
    %2 = tpu.matmul %0, %1, %cst {dimension_numbers = #tpu.dot_dimension_numbers<[1], [0], [0], [1], [0, 0, 1, 1], [], []>} : vector<16x13xf32>, vector<13x32xf32>, vector<16x32xf32> -> vector<16x32xf32>
    %c0_3 = arith.constant 0 : index
    %c0_4 = arith.constant 0 : index
    %3 = vector.load %arg1[%c0_3, %c0_4] : memref<16x32xf32, #tpu.memory_space<vmem>>, vector<16x32xf32>
    %4 = arith.addf %2, %3 : vector<16x32xf32>
    %c0_5 = arith.constant 0 : index
    %c0_6 = arith.constant 0 : index
    %5 = vector.load %arg2[%c0_5, %c0_6] : memref<16x16xf32, #tpu.memory_space<vmem>>, vector<16x16xf32>
    %c0_7 = arith.constant 0 : index
    %c0_8 = arith.constant 0 : index
    %c0_9 = arith.constant 0 : index
    %c0_10 = arith.constant 0 : index
    %6 = vector.load %arg4[%c0_7, %c0_8, %c0_9, %c0_10] : memref<2x4x32x32xf32, #tpu.memory_space<vmem>>, vector<1x1x32x32xf32>
    %7 = vector.shape_cast %6 : vector<1x1x32x32xf32> to vector<32x32xf32>
    %cst_11 = arith.constant dense<0.000000e+00> : vector<16x32xf32>
    %8 = tpu.matmul %4, %7, %cst_11 {dimension_numbers = #tpu.dot_dimension_numbers<[1], [0], [0], [1], [0, 0, 1, 1], [], []>} : vector<16x32xf32>, vector<32x32xf32>, vector<16x32xf32> -> vector<16x32xf32>
    %cst_12 = arith.constant dense<0.000000e+00> : vector<16x16xf32>
    %9 = tpu.matmul %8, %4, %cst_12 {dimension_numbers = #tpu.dot_dimension_numbers<[1], [1], [0], [0], [0, 0, 1, 0], [], []>} : vector<16x32xf32>, vector<16x32xf32>, vector<16x16xf32> -> vector<16x16xf32>
    %cst_13 = arith.constant 0.000000e+00 : f32
    %10 = vector.broadcast %cst_13 : f32 to vector<16x16xf32>
    %11 = arith.maximumf %9, %10 : vector<16x16xf32>
    %12 = arith.mulf %11, %5 : vector<16x16xf32>
    %c0_14 = arith.constant 0 : index
    %c1 = arith.constant 1 : index
    %c0_15 = arith.constant 0 : index
    %c0_16 = arith.constant 0 : index
    %13 = vector.load %arg4[%c0_14, %c1, %c0_15, %c0_16] : memref<2x4x32x32xf32, #tpu.memory_space<vmem>>, vector<1x1x32x32xf32>
    %14 = vector.shape_cast %13 : vector<1x1x32x32xf32> to vector<32x32xf32>
    %cst_17 = arith.constant dense<0.000000e+00> : vector<16x32xf32>
    %15 = tpu.matmul %4, %14, %cst_17 {dimension_numbers = #tpu.dot_dimension_numbers<[1], [0], [0], [1], [0, 0, 1, 1], [], []>} : vector<16x32xf32>, vector<32x32xf32>, vector<16x32xf32> -> vector<16x32xf32>
    %cst_18 = arith.constant dense<0.000000e+00> : vector<16x32xf32>
    %16 = tpu.matmul %12, %15, %cst_18 {dimension_numbers = #tpu.dot_dimension_numbers<[1], [0], [0], [1], [0, 0, 1, 1], [], []>} : vector<16x16xf32>, vector<16x32xf32>, vector<16x32xf32> -> vector<16x32xf32>
    %17 = arith.addf %4, %16 : vector<16x32xf32>
    %c0_19 = arith.constant 0 : index
    %c2 = arith.constant 2 : index
    %c0_20 = arith.constant 0 : index
    %c0_21 = arith.constant 0 : index
    %18 = vector.load %arg5[%c0_19, %c2, %c0_20, %c0_21] : memref<2x6x1x32xf32, #tpu.memory_space<vmem>>, vector<1x1x1x32xf32>
    %19 = vector.shape_cast %18 : vector<1x1x1x32xf32> to vector<1x32xf32>
    %c0_22 = arith.constant 0 : index
    %c3 = arith.constant 3 : index
    %c0_23 = arith.constant 0 : index
    %c0_24 = arith.constant 0 : index
    %20 = vector.load %arg5[%c0_22, %c3, %c0_23, %c0_24] : memref<2x6x1x32xf32, #tpu.memory_space<vmem>>, vector<1x1x1x32xf32>
    %21 = vector.shape_cast %20 : vector<1x1x1x32xf32> to vector<1x32xf32>
    %cst_25 = arith.constant dense<0.000000e+00> : vector<16xf32>
    %22 = vector.multi_reduction <add>, %17, %cst_25 [1] : vector<16x32xf32> to vector<16xf32>
    %23 = vector.shape_cast %22 : vector<16xf32> to vector<16x1xf32>
    %cst_26 = arith.constant 3.200000e+01 : f32
    %24 = vector.broadcast %cst_26 : f32 to vector<16x1xf32>
    %25 = arith.divf %23, %24 : vector<16x1xf32>
    %26 = vector.broadcast %25 : vector<16x1xf32> to vector<16x32xf32>
    %27 = arith.subf %17, %26 : vector<16x32xf32>
    %28 = arith.mulf %27, %27 : vector<16x32xf32>
    %cst_27 = arith.constant dense<0.000000e+00> : vector<16xf32>
    %29 = vector.multi_reduction <add>, %28, %cst_27 [1] : vector<16x32xf32> to vector<16xf32>
    %30 = vector.shape_cast %29 : vector<16xf32> to vector<16x1xf32>
    %cst_28 = arith.constant 3.200000e+01 : f32
    %31 = vector.broadcast %cst_28 : f32 to vector<16x1xf32>
    %32 = arith.divf %30, %31 : vector<16x1xf32>
    %33 = vector.broadcast %25 : vector<16x1xf32> to vector<16x32xf32>
    %34 = arith.subf %17, %33 : vector<16x32xf32>
    %cst_29 = arith.constant 9.99999974E-6 : f32
    %35 = vector.broadcast %cst_29 : f32 to vector<16x1xf32>
    %36 = arith.addf %32, %35 : vector<16x1xf32>
    %37 = math.rsqrt %36 : vector<16x1xf32>
    %38 = vector.broadcast %37 : vector<16x1xf32> to vector<16x32xf32>
    %39 = arith.mulf %34, %38 : vector<16x32xf32>
    %40 = vector.broadcast %19 : vector<1x32xf32> to vector<16x32xf32>
    %41 = arith.mulf %39, %40 : vector<16x32xf32>
    %42 = vector.broadcast %21 : vector<1x32xf32> to vector<16x32xf32>
    %43 = arith.addf %41, %42 : vector<16x32xf32>
    %c0_30 = arith.constant 0 : index
    %c2_31 = arith.constant 2 : index
    %c0_32 = arith.constant 0 : index
    %c0_33 = arith.constant 0 : index
    %44 = vector.load %arg4[%c0_30, %c2_31, %c0_32, %c0_33] : memref<2x4x32x32xf32, #tpu.memory_space<vmem>>, vector<1x1x32x32xf32>
    %45 = vector.shape_cast %44 : vector<1x1x32x32xf32> to vector<32x32xf32>
    %cst_34 = arith.constant dense<0.000000e+00> : vector<16x32xf32>
    %46 = tpu.matmul %43, %45, %cst_34 {dimension_numbers = #tpu.dot_dimension_numbers<[1], [0], [0], [1], [0, 0, 1, 1], [], []>} : vector<16x32xf32>, vector<32x32xf32>, vector<16x32xf32> -> vector<16x32xf32>
    %c0_35 = arith.constant 0 : index
    %c0_36 = arith.constant 0 : index
    %c0_37 = arith.constant 0 : index
    %c0_38 = arith.constant 0 : index
    %47 = vector.load %arg5[%c0_35, %c0_36, %c0_37, %c0_38] : memref<2x6x1x32xf32, #tpu.memory_space<vmem>>, vector<1x1x1x32xf32>
    %48 = vector.shape_cast %47 : vector<1x1x1x32xf32> to vector<1x32xf32>
    %49 = vector.broadcast %48 : vector<1x32xf32> to vector<16x32xf32>
    %50 = arith.addf %46, %49 : vector<16x32xf32>
    %cst_39 = arith.constant 0.000000e+00 : f32
    %51 = vector.broadcast %cst_39 : f32 to vector<16x32xf32>
    %52 = arith.maximumf %50, %51 : vector<16x32xf32>
    %c0_40 = arith.constant 0 : index
    %c3_41 = arith.constant 3 : index
    %c0_42 = arith.constant 0 : index
    %c0_43 = arith.constant 0 : index
    %53 = vector.load %arg4[%c0_40, %c3_41, %c0_42, %c0_43] : memref<2x4x32x32xf32, #tpu.memory_space<vmem>>, vector<1x1x32x32xf32>
    %54 = vector.shape_cast %53 : vector<1x1x32x32xf32> to vector<32x32xf32>
    %cst_44 = arith.constant dense<0.000000e+00> : vector<16x32xf32>
    %55 = tpu.matmul %52, %54, %cst_44 {dimension_numbers = #tpu.dot_dimension_numbers<[1], [0], [0], [1], [0, 0, 1, 1], [], []>} : vector<16x32xf32>, vector<32x32xf32>, vector<16x32xf32> -> vector<16x32xf32>
    %c0_45 = arith.constant 0 : index
    %c1_46 = arith.constant 1 : index
    %c0_47 = arith.constant 0 : index
    %c0_48 = arith.constant 0 : index
    %56 = vector.load %arg5[%c0_45, %c1_46, %c0_47, %c0_48] : memref<2x6x1x32xf32, #tpu.memory_space<vmem>>, vector<1x1x1x32xf32>
    %57 = vector.shape_cast %56 : vector<1x1x1x32xf32> to vector<1x32xf32>
    %58 = vector.broadcast %57 : vector<1x32xf32> to vector<16x32xf32>
    %59 = arith.addf %55, %58 : vector<16x32xf32>
    %60 = arith.addf %43, %59 : vector<16x32xf32>
    %c0_49 = arith.constant 0 : index
    %c4 = arith.constant 4 : index
    %c0_50 = arith.constant 0 : index
    %c0_51 = arith.constant 0 : index
    %61 = vector.load %arg5[%c0_49, %c4, %c0_50, %c0_51] : memref<2x6x1x32xf32, #tpu.memory_space<vmem>>, vector<1x1x1x32xf32>
    %62 = vector.shape_cast %61 : vector<1x1x1x32xf32> to vector<1x32xf32>
    %c0_52 = arith.constant 0 : index
    %c5 = arith.constant 5 : index
    %c0_53 = arith.constant 0 : index
    %c0_54 = arith.constant 0 : index
    %63 = vector.load %arg5[%c0_52, %c5, %c0_53, %c0_54] : memref<2x6x1x32xf32, #tpu.memory_space<vmem>>, vector<1x1x1x32xf32>
    %64 = vector.shape_cast %63 : vector<1x1x1x32xf32> to vector<1x32xf32>
    %cst_55 = arith.constant dense<0.000000e+00> : vector<16xf32>
    %65 = vector.multi_reduction <add>, %60, %cst_55 [1] : vector<16x32xf32> to vector<16xf32>
    %66 = vector.shape_cast %65 : vector<16xf32> to vector<16x1xf32>
    %cst_56 = arith.constant 3.200000e+01 : f32
    %67 = vector.broadcast %cst_56 : f32 to vector<16x1xf32>
    %68 = arith.divf %66, %67 : vector<16x1xf32>
    %69 = vector.broadcast %68 : vector<16x1xf32> to vector<16x32xf32>
    %70 = arith.subf %60, %69 : vector<16x32xf32>
    %71 = arith.mulf %70, %70 : vector<16x32xf32>
    %cst_57 = arith.constant dense<0.000000e+00> : vector<16xf32>
    %72 = vector.multi_reduction <add>, %71, %cst_57 [1] : vector<16x32xf32> to vector<16xf32>
    %73 = vector.shape_cast %72 : vector<16xf32> to vector<16x1xf32>
    %cst_58 = arith.constant 3.200000e+01 : f32
    %74 = vector.broadcast %cst_58 : f32 to vector<16x1xf32>
    %75 = arith.divf %73, %74 : vector<16x1xf32>
    %76 = vector.broadcast %68 : vector<16x1xf32> to vector<16x32xf32>
    %77 = arith.subf %60, %76 : vector<16x32xf32>
    %cst_59 = arith.constant 9.99999974E-6 : f32
    %78 = vector.broadcast %cst_59 : f32 to vector<16x1xf32>
    %79 = arith.addf %75, %78 : vector<16x1xf32>
    %80 = math.rsqrt %79 : vector<16x1xf32>
    %81 = vector.broadcast %80 : vector<16x1xf32> to vector<16x32xf32>
    %82 = arith.mulf %77, %81 : vector<16x32xf32>
    %83 = vector.broadcast %62 : vector<1x32xf32> to vector<16x32xf32>
    %84 = arith.mulf %82, %83 : vector<16x32xf32>
    %85 = vector.broadcast %64 : vector<1x32xf32> to vector<16x32xf32>
    %86 = arith.addf %84, %85 : vector<16x32xf32>
    %c1_60 = arith.constant 1 : index
    %c0_61 = arith.constant 0 : index
    %c0_62 = arith.constant 0 : index
    %c0_63 = arith.constant 0 : index
    %87 = vector.load %arg4[%c1_60, %c0_61, %c0_62, %c0_63] : memref<2x4x32x32xf32, #tpu.memory_space<vmem>>, vector<1x1x32x32xf32>
    %88 = vector.shape_cast %87 : vector<1x1x32x32xf32> to vector<32x32xf32>
    %cst_64 = arith.constant dense<0.000000e+00> : vector<16x32xf32>
    %89 = tpu.matmul %86, %88, %cst_64 {dimension_numbers = #tpu.dot_dimension_numbers<[1], [0], [0], [1], [0, 0, 1, 1], [], []>} : vector<16x32xf32>, vector<32x32xf32>, vector<16x32xf32> -> vector<16x32xf32>
    %cst_65 = arith.constant dense<0.000000e+00> : vector<16x16xf32>
    %90 = tpu.matmul %89, %86, %cst_65 {dimension_numbers = #tpu.dot_dimension_numbers<[1], [1], [0], [0], [0, 0, 1, 0], [], []>} : vector<16x32xf32>, vector<16x32xf32>, vector<16x16xf32> -> vector<16x16xf32>
    %cst_66 = arith.constant 0.000000e+00 : f32
    %91 = vector.broadcast %cst_66 : f32 to vector<16x16xf32>
    %92 = arith.maximumf %90, %91 : vector<16x16xf32>
    %93 = arith.mulf %92, %5 : vector<16x16xf32>
    %c1_67 = arith.constant 1 : index
    %c1_68 = arith.constant 1 : index
    %c0_69 = arith.constant 0 : index
    %c0_70 = arith.constant 0 : index
    %94 = vector.load %arg4[%c1_67, %c1_68, %c0_69, %c0_70] : memref<2x4x32x32xf32, #tpu.memory_space<vmem>>, vector<1x1x32x32xf32>
    %95 = vector.shape_cast %94 : vector<1x1x32x32xf32> to vector<32x32xf32>
    %cst_71 = arith.constant dense<0.000000e+00> : vector<16x32xf32>
    %96 = tpu.matmul %86, %95, %cst_71 {dimension_numbers = #tpu.dot_dimension_numbers<[1], [0], [0], [1], [0, 0, 1, 1], [], []>} : vector<16x32xf32>, vector<32x32xf32>, vector<16x32xf32> -> vector<16x32xf32>
    %cst_72 = arith.constant dense<0.000000e+00> : vector<16x32xf32>
    %97 = tpu.matmul %93, %96, %cst_72 {dimension_numbers = #tpu.dot_dimension_numbers<[1], [0], [0], [1], [0, 0, 1, 1], [], []>} : vector<16x16xf32>, vector<16x32xf32>, vector<16x32xf32> -> vector<16x32xf32>
    %98 = arith.addf %86, %97 : vector<16x32xf32>
    %c1_73 = arith.constant 1 : index
    %c2_74 = arith.constant 2 : index
    %c0_75 = arith.constant 0 : index
    %c0_76 = arith.constant 0 : index
    %99 = vector.load %arg5[%c1_73, %c2_74, %c0_75, %c0_76] : memref<2x6x1x32xf32, #tpu.memory_space<vmem>>, vector<1x1x1x32xf32>
    %100 = vector.shape_cast %99 : vector<1x1x1x32xf32> to vector<1x32xf32>
    %c1_77 = arith.constant 1 : index
    %c3_78 = arith.constant 3 : index
    %c0_79 = arith.constant 0 : index
    %c0_80 = arith.constant 0 : index
    %101 = vector.load %arg5[%c1_77, %c3_78, %c0_79, %c0_80] : memref<2x6x1x32xf32, #tpu.memory_space<vmem>>, vector<1x1x1x32xf32>
    %102 = vector.shape_cast %101 : vector<1x1x1x32xf32> to vector<1x32xf32>
    %cst_81 = arith.constant dense<0.000000e+00> : vector<16xf32>
    %103 = vector.multi_reduction <add>, %98, %cst_81 [1] : vector<16x32xf32> to vector<16xf32>
    %104 = vector.shape_cast %103 : vector<16xf32> to vector<16x1xf32>
    %cst_82 = arith.constant 3.200000e+01 : f32
    %105 = vector.broadcast %cst_82 : f32 to vector<16x1xf32>
    %106 = arith.divf %104, %105 : vector<16x1xf32>
    %107 = vector.broadcast %106 : vector<16x1xf32> to vector<16x32xf32>
    %108 = arith.subf %98, %107 : vector<16x32xf32>
    %109 = arith.mulf %108, %108 : vector<16x32xf32>
    %cst_83 = arith.constant dense<0.000000e+00> : vector<16xf32>
    %110 = vector.multi_reduction <add>, %109, %cst_83 [1] : vector<16x32xf32> to vector<16xf32>
    %111 = vector.shape_cast %110 : vector<16xf32> to vector<16x1xf32>
    %cst_84 = arith.constant 3.200000e+01 : f32
    %112 = vector.broadcast %cst_84 : f32 to vector<16x1xf32>
    %113 = arith.divf %111, %112 : vector<16x1xf32>
    %114 = vector.broadcast %106 : vector<16x1xf32> to vector<16x32xf32>
    %115 = arith.subf %98, %114 : vector<16x32xf32>
    %cst_85 = arith.constant 9.99999974E-6 : f32
    %116 = vector.broadcast %cst_85 : f32 to vector<16x1xf32>
    %117 = arith.addf %113, %116 : vector<16x1xf32>
    %118 = math.rsqrt %117 : vector<16x1xf32>
    %119 = vector.broadcast %118 : vector<16x1xf32> to vector<16x32xf32>
    %120 = arith.mulf %115, %119 : vector<16x32xf32>
    %121 = vector.broadcast %100 : vector<1x32xf32> to vector<16x32xf32>
    %122 = arith.mulf %120, %121 : vector<16x32xf32>
    %123 = vector.broadcast %102 : vector<1x32xf32> to vector<16x32xf32>
    %124 = arith.addf %122, %123 : vector<16x32xf32>
    %c1_86 = arith.constant 1 : index
    %c2_87 = arith.constant 2 : index
    %c0_88 = arith.constant 0 : index
    %c0_89 = arith.constant 0 : index
    %125 = vector.load %arg4[%c1_86, %c2_87, %c0_88, %c0_89] : memref<2x4x32x32xf32, #tpu.memory_space<vmem>>, vector<1x1x32x32xf32>
    %126 = vector.shape_cast %125 : vector<1x1x32x32xf32> to vector<32x32xf32>
    %cst_90 = arith.constant dense<0.000000e+00> : vector<16x32xf32>
    %127 = tpu.matmul %124, %126, %cst_90 {dimension_numbers = #tpu.dot_dimension_numbers<[1], [0], [0], [1], [0, 0, 1, 1], [], []>} : vector<16x32xf32>, vector<32x32xf32>, vector<16x32xf32> -> vector<16x32xf32>
    %c1_91 = arith.constant 1 : index
    %c0_92 = arith.constant 0 : index
    %c0_93 = arith.constant 0 : index
    %c0_94 = arith.constant 0 : index
    %128 = vector.load %arg5[%c1_91, %c0_92, %c0_93, %c0_94] : memref<2x6x1x32xf32, #tpu.memory_space<vmem>>, vector<1x1x1x32xf32>
    %129 = vector.shape_cast %128 : vector<1x1x1x32xf32> to vector<1x32xf32>
    %130 = vector.broadcast %129 : vector<1x32xf32> to vector<16x32xf32>
    %131 = arith.addf %127, %130 : vector<16x32xf32>
    %cst_95 = arith.constant 0.000000e+00 : f32
    %132 = vector.broadcast %cst_95 : f32 to vector<16x32xf32>
    %133 = arith.maximumf %131, %132 : vector<16x32xf32>
    %c1_96 = arith.constant 1 : index
    %c3_97 = arith.constant 3 : index
    %c0_98 = arith.constant 0 : index
    %c0_99 = arith.constant 0 : index
    %134 = vector.load %arg4[%c1_96, %c3_97, %c0_98, %c0_99] : memref<2x4x32x32xf32, #tpu.memory_space<vmem>>, vector<1x1x32x32xf32>
    %135 = vector.shape_cast %134 : vector<1x1x32x32xf32> to vector<32x32xf32>
    %cst_100 = arith.constant dense<0.000000e+00> : vector<16x32xf32>
    %136 = tpu.matmul %133, %135, %cst_100 {dimension_numbers = #tpu.dot_dimension_numbers<[1], [0], [0], [1], [0, 0, 1, 1], [], []>} : vector<16x32xf32>, vector<32x32xf32>, vector<16x32xf32> -> vector<16x32xf32>
    %c1_101 = arith.constant 1 : index
    %c1_102 = arith.constant 1 : index
    %c0_103 = arith.constant 0 : index
    %c0_104 = arith.constant 0 : index
    %137 = vector.load %arg5[%c1_101, %c1_102, %c0_103, %c0_104] : memref<2x6x1x32xf32, #tpu.memory_space<vmem>>, vector<1x1x1x32xf32>
    %138 = vector.shape_cast %137 : vector<1x1x1x32xf32> to vector<1x32xf32>
    %139 = vector.broadcast %138 : vector<1x32xf32> to vector<16x32xf32>
    %140 = arith.addf %136, %139 : vector<16x32xf32>
    %141 = arith.addf %124, %140 : vector<16x32xf32>
    %c1_105 = arith.constant 1 : index
    %c4_106 = arith.constant 4 : index
    %c0_107 = arith.constant 0 : index
    %c0_108 = arith.constant 0 : index
    %142 = vector.load %arg5[%c1_105, %c4_106, %c0_107, %c0_108] : memref<2x6x1x32xf32, #tpu.memory_space<vmem>>, vector<1x1x1x32xf32>
    %143 = vector.shape_cast %142 : vector<1x1x1x32xf32> to vector<1x32xf32>
    %c1_109 = arith.constant 1 : index
    %c5_110 = arith.constant 5 : index
    %c0_111 = arith.constant 0 : index
    %c0_112 = arith.constant 0 : index
    %144 = vector.load %arg5[%c1_109, %c5_110, %c0_111, %c0_112] : memref<2x6x1x32xf32, #tpu.memory_space<vmem>>, vector<1x1x1x32xf32>
    %145 = vector.shape_cast %144 : vector<1x1x1x32xf32> to vector<1x32xf32>
    %cst_113 = arith.constant dense<0.000000e+00> : vector<16xf32>
    %146 = vector.multi_reduction <add>, %141, %cst_113 [1] : vector<16x32xf32> to vector<16xf32>
    %147 = vector.shape_cast %146 : vector<16xf32> to vector<16x1xf32>
    %cst_114 = arith.constant 3.200000e+01 : f32
    %148 = vector.broadcast %cst_114 : f32 to vector<16x1xf32>
    %149 = arith.divf %147, %148 : vector<16x1xf32>
    %150 = vector.broadcast %149 : vector<16x1xf32> to vector<16x32xf32>
    %151 = arith.subf %141, %150 : vector<16x32xf32>
    %152 = arith.mulf %151, %151 : vector<16x32xf32>
    %cst_115 = arith.constant dense<0.000000e+00> : vector<16xf32>
    %153 = vector.multi_reduction <add>, %152, %cst_115 [1] : vector<16x32xf32> to vector<16xf32>
    %154 = vector.shape_cast %153 : vector<16xf32> to vector<16x1xf32>
    %cst_116 = arith.constant 3.200000e+01 : f32
    %155 = vector.broadcast %cst_116 : f32 to vector<16x1xf32>
    %156 = arith.divf %154, %155 : vector<16x1xf32>
    %157 = vector.broadcast %149 : vector<16x1xf32> to vector<16x32xf32>
    %158 = arith.subf %141, %157 : vector<16x32xf32>
    %cst_117 = arith.constant 9.99999974E-6 : f32
    %159 = vector.broadcast %cst_117 : f32 to vector<16x1xf32>
    %160 = arith.addf %156, %159 : vector<16x1xf32>
    %161 = math.rsqrt %160 : vector<16x1xf32>
    %162 = vector.broadcast %161 : vector<16x1xf32> to vector<16x32xf32>
    %163 = arith.mulf %158, %162 : vector<16x32xf32>
    %164 = vector.broadcast %143 : vector<1x32xf32> to vector<16x32xf32>
    %165 = arith.mulf %163, %164 : vector<16x32xf32>
    %166 = vector.broadcast %145 : vector<1x32xf32> to vector<16x32xf32>
    %167 = arith.addf %165, %166 : vector<16x32xf32>
    %168 = tpu.iota {dimensions = array<i32: 0>} : vector<8x16xi32>
    %169 = tpu.iota {dimensions = array<i32: 1>} : vector<8x16xi32>
    %c2_i32 = arith.constant 2 : i32
    %170 = vector.broadcast %c2_i32 : i32 to vector<8x16xi32>
    %171 = arith.muli %170, %168 : vector<8x16xi32>
    %172 = arith.cmpi eq, %169, %171 : vector<8x16xi32>
    %cst_118 = arith.constant 1.000000e+00 : f32
    %cst_119 = arith.constant 0.000000e+00 : f32
    %173 = vector.broadcast %cst_118 : f32 to vector<8x16xf32>
    %174 = vector.broadcast %cst_119 : f32 to vector<8x16xf32>
    %175 = arith.select %172, %173, %174 : vector<8x16xi1>, vector<8x16xf32>
    %cst_120 = arith.constant dense<0.000000e+00> : vector<8x32xf32>
    %176 = tpu.matmul %175, %167, %cst_120 {dimension_numbers = #tpu.dot_dimension_numbers<[1], [0], [0], [1], [0, 0, 1, 1], [], []>} : vector<8x16xf32>, vector<16x32xf32>, vector<8x32xf32> -> vector<8x32xf32>
    %c0_121 = arith.constant 0 : index
    %c0_122 = arith.constant 0 : index
    %177 = vector.load %arg6[%c0_121, %c0_122] : memref<32x128xf32, #tpu.memory_space<vmem>>, vector<32x128xf32>
    %cst_123 = arith.constant dense<0.000000e+00> : vector<8x128xf32>
    %178 = tpu.matmul %176, %177, %cst_123 {dimension_numbers = #tpu.dot_dimension_numbers<[1], [0], [0], [1], [0, 0, 1, 1], [], []>} : vector<8x32xf32>, vector<32x128xf32>, vector<8x128xf32> -> vector<8x128xf32>
    %c0_124 = arith.constant 0 : index
    %c0_125 = arith.constant 0 : index
    %179 = vector.load %arg7[%c0_124, %c0_125] : memref<1x128xf32, #tpu.memory_space<vmem>>, vector<1x128xf32>
    %180 = vector.broadcast %179 : vector<1x128xf32> to vector<8x128xf32>
    %181 = arith.addf %178, %180 : vector<8x128xf32>
    %c0_126 = arith.constant 0 : index
    %c0_127 = arith.constant 0 : index
    %182 = vector.load %arg8[%c0_126, %c0_127] : memref<8x128xf32, #tpu.memory_space<vmem>>, vector<8x128xf32>
    tpu.vector_store %arg8[%c0_126, %c0_127], %181 {strides = array<i32>} : memref<8x128xf32, #tpu.memory_space<vmem>>, vector<8x128xf32>,
    return
  }
}

</mosaic_0001>

<llo_original>
// kernel: forward.1
$region0: #{forward.1}
  #allocation0 [shape = 'u32[]', space=smem, size = 0x4, offset = 0x4, fixed_abs, tag = 'smem constant byte address 0x4 - core index']
  #allocation1 [shape = 'u32[144,128]{1,0:T(1,128)}', space=vmem, size = 0x12000, scoped, tag = 'internal scratch']
  %s0 = inlined_call_operand.vmem [shape: f32[16,13], index: 0, kind: input, shape index: {}]
  %s1 = inlined_call_operand.vmem [shape: f32[16,32], index: 1, kind: input, shape index: {}]
  %s2 = inlined_call_operand.vmem [shape: f32[16,16], index: 2, kind: input, shape index: {}]
  %s3 = inlined_call_operand.vmem [shape: f32[13,32], index: 3, kind: input, shape index: {}]
  %s4 = inlined_call_operand.vmem [shape: f32[2,4,32,32], index: 4, kind: input, shape index: {}]
  %s5 = inlined_call_operand.vmem [shape: f32[2,6,1,32], index: 5, kind: input, shape index: {}]
  %s6 = inlined_call_operand.vmem [shape: f32[32,128], index: 6, kind: input, shape index: {}]
  %s7 = inlined_call_operand.vmem [shape: f32[1,128], index: 7, kind: input, shape index: {}]
  %s8 = inlined_call_operand.hbm [shape: f32[8,128], index: 8, kind: output, shape index: {}]
  %s9 = sld [smem:[#allocation0]]
  $region42: #{forward.1} parent=0
    _
  %s11 = ssub.s32 1, %s9
  %s12 = scalar_select 0, %s11, %s9
  $region1: #{forward.1} parent=0
    #allocation2 [shape = 'u8[4096]{0}', space=vmem, size = 0x1000, scoped, tag = 'output window, operand 0, single buffered']
    #allocation3 [shape = 's32[1]{0}', space=sflag, size = 0x4, scoped, tag = 'scoped memory for forward.1']
    %13 = vsyncpa [#allocation3], 0
    // Predicated region
    $region2: #{forward.1} parent=1 // pred_check
      _
    $region3: #{forward.1} parent=1 // pred_check_branch
      %15 = sbr.rel (0) target = $region5
    $region4: #{forward.1} parent=1 // pred_region
      _
    $region5: #{forward.1} parent=1 // pred_fallthru
      _
    // Predicated region
    $region6: #{forward.1} parent=1 // pred_check
      _
    $region7: #{forward.1} parent=1 // pred_check_branch
      %17 = sbr.rel (0) target = $region9
    $region8: #{forward.1} parent=1 // pred_region
      _
    $region9: #{forward.1} parent=1 // pred_fallthru
      _
    // Predicated region
    $region10: #{forward.1} parent=1 // pred_check
      _
    $region11: #{forward.1} parent=1 // pred_check_branch
      %19 = sbr.rel (0) target = $region13
    $region12: #{forward.1} parent=1 // pred_region
      _
    $region13: #{forward.1} parent=1 // pred_fallthru
      _
    // Predicated region
    $region14: #{forward.1} parent=1 // pred_check
      _
    $region15: #{forward.1} parent=1 // pred_check_branch
      %21 = sbr.rel (0) target = $region17
    $region16: #{forward.1} parent=1 // pred_region
      _
    $region17: #{forward.1} parent=1 // pred_fallthru
      _
    // Predicated region
    $region18: #{forward.1} parent=1 // pred_check
      _
    $region19: #{forward.1} parent=1 // pred_check_branch
      %23 = sbr.rel (0) target = $region21
    $region20: #{forward.1} parent=1 // pred_region
      _
    $region21: #{forward.1} parent=1 // pred_fallthru
      _
    // Predicated region
    $region22: #{forward.1} parent=1 // pred_check
      _
    $region23: #{forward.1} parent=1 // pred_check_branch
      %25 = sbr.rel (0) target = $region25
    $region24: #{forward.1} parent=1 // pred_region
      _
    $region25: #{forward.1} parent=1 // pred_fallthru
      _
    // Predicated region
    $region26: #{forward.1} parent=1 // pred_check
      _
    $region27: #{forward.1} parent=1 // pred_check_branch
      %27 = sbr.rel (0) target = $region29
    $region28: #{forward.1} parent=1 // pred_region
      _
    $region29: #{forward.1} parent=1 // pred_fallthru
      _
    // Predicated region
    $region30: #{forward.1} parent=1 // pred_check
      _
    $region31: #{forward.1} parent=1 // pred_check_branch
      %29 = sbr.rel (0) target = $region33
    $region32: #{forward.1} parent=1 // pred_region
      _
    $region33: #{forward.1} parent=1 // pred_fallthru
      _
    %v30 = vld [vmem:[%s0] sm:$0xff]
    %v31 = vld [vmem:[%s0 + $0x8] sm:$0xff]
    %v32 = vld [vmem:[%s3] sm:$0xff]
    %v33 = vld [vmem:[%s3 + $0x8] sm:$0x1f]
    %v34 = vld [vmem:[%s1] sm:$0xff]
    %v35 = vld [vmem:[%s1 + $0x8] sm:$0xff]
    %vm36 = vcmask 105472
    %v38 = vsel %vm36, %v30, 0
    %v41 = vsel %vm36, %v31, 0
    %vm43 = vcmask 1044480
    %v45 = vsel %vm43, %v33, 0
    %47 = vmatprep.subr.mxu0 0.0
    %48 = vmatpush1.msra.mxu0 %v32
    %49 = vmatprep.subr.mxu0 0.0
    %50 = vmatpush1.msra.mxu0 %v45
    %51 = vmatprep.subr.mxu0 0.0
    %52 = vmatpush1.msra.mxu0 0.0
    %53 = vmatprep.subr.mxu0 0.0
    %54 = vmatpush1.msra.mxu0 0.0
    %55 = vmatprep.subr.mxu0 0.0
    %56 = vmatpush1.msra.mxu0 0.0
    %57 = vmatprep.subr.mxu0 0.0
    %58 = vmatpush1.msra.mxu0 0.0
    %59 = vmatprep.subr.mxu0 0.0
    %60 = vmatpush1.msra.mxu0 0.0
    %61 = vmatprep.subr.mxu0 0.0
    %62 = vmatpush1.msra.mxu0 0.0
    %63 = vmatprep.subr.mxu0 0.0
    %64 = vmatpush1.msra.mxu0 0.0
    %65 = vmatprep.subr.mxu0 0.0
    %66 = vmatpush1.msra.mxu0 0.0
    %67 = vmatprep.subr.mxu0 0.0
    %68 = vmatpush1.msra.mxu0 0.0
    %69 = vmatprep.subr.mxu0 0.0
    %70 = vmatpush1.msra.mxu0 0.0
    %71 = vmatprep.subr.mxu0 0.0
    %72 = vmatpush1.msra.mxu0 0.0
    %73 = vmatprep.subr.mxu0 0.0
    %74 = vmatpush1.msra.mxu0 0.0
    %75 = vmatprep.subr.mxu0 0.0
    %76 = vmatpush1.msra.mxu0 0.0
    %77 = vmatprep.subr.mxu0 0.0
    %78 = vmatpush1.msra.mxu0 0.0
    %79 = vmatprep.subr.mxu0 0.0
    %80 = vmatpush1.msra.mxu0 0.0
    %81 = vmatprep.subr.mxu0 0.0
    %82 = vmatpush1.msra.mxu0 0.0
    %83 = vmatprep.subr.mxu0 0.0
    %84 = vmatpush1.msra.mxu0 0.0
    %85 = vmatprep.subr.mxu0 0.0
    %86 = vmatpush1.msra.mxu0 0.0
    %87 = vmatprep.subr.mxu0 0.0
    %88 = vmatpush1.msra.mxu0 0.0
    %89 = vmatprep.subr.mxu0 0.0
    %90 = vmatpush1.msra.mxu0 0.0
    %91 = vmatprep.subr.mxu0 0.0
    %92 = vmatpush1.msra.mxu0 0.0
    %93 = vmatprep.subr.mxu0 0.0
    %94 = vmatpush1.msra.mxu0 0.0
    %95 = vmatprep.subr.mxu0 0.0
    %96 = vmatpush1.msra.mxu0 0.0
    %97 = vmatprep.subr.mxu0 0.0
    %98 = vmatpush1.msra.mxu0 0.0
    %99 = vmatprep.subr.mxu0 0.0
    %100 = vmatpush1.msra.mxu0 0.0
    %101 = vmatprep.subr.mxu0 0.0
    %102 = vmatpush1.msra.mxu0 0.0
    %103 = vmatprep.subr.mxu0 0.0
    %104 = vmatpush1.msra.mxu0 0.0
    %105 = vmatprep.subr.mxu0 0.0
    %106 = vmatpush1.msra.mxu0 0.0
    %107 = vmatprep.subr.mxu0 0.0
    %108 = vmatpush1.msra.mxu0 0.0
    %109 = vmatprep.subr.mxu0 0.0
    %110 = vmatpush1.msra.mxu0 0.0
    %111 = vmatprep.mubr.f32.mxu0 0.0
    %112 = vmatmul.mubr.f32.gmra.mrb[0].mxu0 %v38
    %v113 = vpop.f32.mrb[0].mxu0
    %v114 = vadd.f32 %v34, %v113
    %v115 = vpop.f32.mrb[0].mxu0
    %116 = vmatprep.mubr.f32.mxu0 0.0
    %117 = vmatmul.mubr.f32.gmra.mrb[0].mxu0 %v41
    %v118 = vpop.f32.mrb[0].mxu0
    %v119 = vadd.f32 %v35, %v118
    %v120 = vpop.f32.mrb[0].mxu0
    %121 = vdwg.mxu0
    %v122 = vld [vmem:[%s2] sm:$0xff]
    %v123 = vld [vmem:[%s2 + $0x8] sm:$0xff]
    %v124 = vld [vmem:[%s4] sm:$0xff]
    %v125 = vld [vmem:[%s4 + $0x8] sm:$0xff]
    %v126 = vld [vmem:[%s4 + $0x10] sm:$0xff]
    %v127 = vld [vmem:[%s4 + $0x18] sm:$0xff]
    %vm128 = vcmask 261120
    %v130 = vsel %vm128, %v114, 0
    %v133 = vsel %vm128, %v119, 0
    %135 = vmatprep.subr.mxu0 0.0
    %136 = vmatpush1.msra.mxu0 %v124
    %137 = vmatprep.subr.mxu0 0.0
    %138 = vmatpush1.msra.mxu0 %v125
    %139 = vmatprep.subr.mxu0 0.0
    %140 = vmatpush1.msra.mxu0 %v126
    %141 = vmatprep.subr.mxu0 0.0
    %142 = vmatpush1.msra.mxu0 %v127
    %143 = vmatprep.subr.mxu0 0.0
    %144 = vmatpush1.msra.mxu0 0.0
    %145 = vmatprep.subr.mxu0 0.0
    %146 = vmatpush1.msra.mxu0 0.0
    %147 = vmatprep.subr.mxu0 0.0
    %148 = vmatpush1.msra.mxu0 0.0
    %149 = vmatprep.subr.mxu0 0.0
    %150 = vmatpush1.msra.mxu0 0.0
    %151 = vmatprep.subr.mxu0 0.0
    %152 = vmatpush1.msra.mxu0 0.0
    %153 = vmatprep.subr.mxu0 0.0
    %154 = vmatpush1.msra.mxu0 0.0
    %155 = vmatprep.subr.mxu0 0.0
    %156 = vmatpush1.msra.mxu0 0.0
    %157 = vmatprep.subr.mxu0 0.0
    %158 = vmatpush1.msra.mxu0 0.0
    %159 = vmatprep.subr.mxu0 0.0
    %160 = vmatpush1.msra.mxu0 0.0
    %161 = vmatprep.subr.mxu0 0.0
    %162 = vmatpush1.msra.mxu0 0.0
    %163 = vmatprep.subr.mxu0 0.0
    %164 = vmatpush1.msra.mxu0 0.0
    %165 = vmatprep.subr.mxu0 0.0
    %166 = vmatpush1.msra.mxu0 0.0
    %167 = vmatprep.subr.mxu0 0.0
    %168 = vmatpush1.msra.mxu0 0.0
    %169 = vmatprep.subr.mxu0 0.0
    %170 = vmatpush1.msra.mxu0 0.0
    %171 = vmatprep.subr.mxu0 0.0
    %172 = vmatpush1.msra.mxu0 0.0
    %173 = vmatprep.subr.mxu0 0.0
    %174 = vmatpush1.msra.mxu0 0.0
    %175 = vmatprep.subr.mxu0 0.0
    %176 = vmatpush1.msra.mxu0 0.0
    %177 = vmatprep.subr.mxu0 0.0
    %178 = vmatpush1.msra.mxu0 0.0
    %179 = vmatprep.subr.mxu0 0.0
    %180 = vmatpush1.msra.mxu0 0.0
    %181 = vmatprep.subr.mxu0 0.0
    %182 = vmatpush1.msra.mxu0 0.0
    %183 = vmatprep.subr.mxu0 0.0
    %184 = vmatpush1.msra.mxu0 0.0
    %185 = vmatprep.subr.mxu0 0.0
    %186 = vmatpush1.msra.mxu0 0.0
    %187 = vmatprep.subr.mxu0 0.0
    %188 = vmatpush1.msra.mxu0 0.0
    %189 = vmatprep.subr.mxu0 0.0
    %190 = vmatpush1.msra.mxu0 0.0
    %191 = vmatprep.subr.mxu0 0.0
    %192 = vmatpush1.msra.mxu0 0.0
    %193 = vmatprep.subr.mxu0 0.0
    %194 = vmatpush1.msra.mxu0 0.0
    %195 = vmatprep.subr.mxu0 0.0
    %196 = vmatpush1.msra.mxu0 0.0
    %197 = vmatprep.subr.mxu0 0.0
    %198 = vmatpush1.msra.mxu0 0.0
    %199 = vmatprep.mubr.f32.mxu0 0.0
    %200 = vmatmul.mubr.f32.gmra.mrb[0].mxu0 %v130
    %v201 = vpop.f32.mrb[0].mxu0
    %v202 = vadd.f32 0.0, %v201
    %v203 = vpop.f32.mrb[0].mxu0
    %204 = vmatprep.mubr.f32.mxu0 0.0
    %205 = vmatmul.mubr.f32.gmra.mrb[0].mxu0 %v133
    %v206 = vpop.f32.mrb[0].mxu0
    %v207 = vadd.f32 0.0, %v206
    %v208 = vpop.f32.mrb[0].mxu0
    %209 = vdwg.mxu0
    %v211 = vsel %vm128, %v202, 0
    %v214 = vsel %vm128, %v207, 0
    %216 = vmatprep.subr.mxu0 0.0
    %217 = vmatpush1.xpose.msra.mxu0 %v130
    %218 = vmatprep.subr.mxu0 0.0
    %219 = vmatpush1.xpose.msra.mxu0 %v133
    %220 = vmatprep.subr.mxu0 0.0
    %221 = vmatpush1.xpose.msra.mxu0 0.0
    %222 = vmatprep.subr.mxu0 0.0
    %223 = vmatpush1.xpose.msra.mxu0 0.0
    %224 = vmatprep.subr.mxu0 0.0
    %225 = vmatpush1.xpose.msra.mxu0 0.0
    %226 = vmatprep.subr.mxu0 0.0
    %227 = vmatpush1.xpose.msra.mxu0 0.0
    %228 = vmatprep.subr.mxu0 0.0
    %229 = vmatpush1.xpose.msra.mxu0 0.0
    %230 = vmatprep.subr.mxu0 0.0
    %231 = vmatpush1.xpose.msra.mxu0 0.0
    %232 = vmatprep.subr.mxu0 0.0
    %233 = vmatpush1.xpose.msra.mxu0 0.0
    %234 = vmatprep.subr.mxu0 0.0
    %235 = vmatpush1.xpose.msra.mxu0 0.0
    %236 = vmatprep.subr.mxu0 0.0
    %237 = vmatpush1.xpose.msra.mxu0 0.0
    %238 = vmatprep.subr.mxu0 0.0
    %239 = vmatpush1.xpose.msra.mxu0 0.0
    %240 = vmatprep.subr.mxu0 0.0
    %241 = vmatpush1.xpose.msra.mxu0 0.0
    %242 = vmatprep.subr.mxu0 0.0
    %243 = vmatpush1.xpose.msra.mxu0 0.0
    %244 = vmatprep.subr.mxu0 0.0
    %245 = vmatpush1.xpose.msra.mxu0 0.0
    %246 = vmatprep.subr.mxu0 0.0
    %247 = vmatpush1.xpose.msra.mxu0 0.0
    %248 = vmatprep.subr.mxu0 0.0
    %249 = vmatpush1.xpose.msra.mxu0 0.0
    %250 = vmatprep.subr.mxu0 0.0
    %251 = vmatpush1.xpose.msra.mxu0 0.0
    %252 = vmatprep.subr.mxu0 0.0
    %253 = vmatpush1.xpose.msra.mxu0 0.0
    %254 = vmatprep.subr.mxu0 0.0
    %255 = vmatpush1.xpose.msra.mxu0 0.0
    %256 = vmatprep.subr.mxu0 0.0
    %257 = vmatpush1.xpose.msra.mxu0 0.0
    %258 = vmatprep.subr.mxu0 0.0
    %259 = vmatpush1.xpose.msra.mxu0 0.0
    %260 = vmatprep.subr.mxu0 0.0
    %261 = vmatpush1.xpose.msra.mxu0 0.0
    %262 = vmatprep.subr.mxu0 0.0
    %263 = vmatpush1.xpose.msra.mxu0 0.0
    %264 = vmatprep.subr.mxu0 0.0
    %265 = vmatpush1.xpose.msra.mxu0 0.0
    %266 = vmatprep.subr.mxu0 0.0
    %267 = vmatpush1.xpose.msra.mxu0 0.0
    %268 = vmatprep.subr.mxu0 0.0
    %269 = vmatpush1.xpose.msra.mxu0 0.0
    %270 = vmatprep.subr.mxu0 0.0
    %271 = vmatpush1.xpose.msra.mxu0 0.0
    %272 = vmatprep.subr.mxu0 0.0
    %273 = vmatpush1.xpose.msra.mxu0 0.0
    %274 = vmatprep.subr.mxu0 0.0
    %275 = vmatpush1.xpose.msra.mxu0 0.0
    %276 = vmatprep.subr.mxu0 0.0
    %277 = vmatpush1.xpose.msra.mxu0 0.0
    %278 = vmatprep.subr.mxu0 0.0
    %279 = vmatpush1.xpose.msra.mxu0 0.0
    %280 = vmatprep.mubr.f32.mxu0 0.0
    %281 = vmatmul.mubr.f32.gmra.mrb[0].mxu0 %v211
    %v282 = vpop.f32.mrb[0].mxu0
    %v283 = vadd.f32 0.0, %v282
    %v284 = vpop.f32.mrb[0].mxu0
    %285 = vmatprep.mubr.f32.mxu0 0.0
    %286 = vmatmul.mubr.f32.gmra.mrb[0].mxu0 %v214
    %v287 = vpop.f32.mrb[0].mxu0
    %v288 = vadd.f32 0.0, %v287
    %v289 = vpop.f32.mrb[0].mxu0
    %290 = vdwg.mxu0
    %v291 = vmax.f32 %v283, 0.0
    %v292 = vmax.f32 %v288, 0.0
    %v293 = vmul.f32 %v291, %v122
    %v294 = vmul.f32 %v292, %v123
    %s295 = scalar_lea.vmem %s4, 32
    %v296 = vld [vmem:[%s295] sm:$0xff]
    %v297 = vld [vmem:[%s295 + $0x8] sm:$0xff]
    %v298 = vld [vmem:[%s295 + $0x10] sm:$0xff]
    %v299 = vld [vmem:[%s295 + $0x18] sm:$0xff]
    %300 = vmatprep.subr.mxu0 0.0
    %301 = vmatpush1.msra.mxu0 %v296
    %302 = vmatprep.subr.mxu0 0.0
    %303 = vmatpush1.msra.mxu0 %v297
    %304 = vmatprep.subr.mxu0 0.0
    %305 = vmatpush1.msra.mxu0 %v298
    %306 = vmatprep.subr.mxu0 0.0
    %307 = vmatpush1.msra.mxu0 %v299
    %308 = vmatprep.subr.mxu0 0.0
    %309 = vmatpush1.msra.mxu0 0.0
    %310 = vmatprep.subr.mxu0 0.0
    %311 = vmatpush1.msra.mxu0 0.0
    %312 = vmatprep.subr.mxu0 0.0
    %313 = vmatpush1.msra.mxu0 0.0
    %314 = vmatprep.subr.mxu0 0.0
    %315 = vmatpush1.msra.mxu0 0.0
    %316 = vmatprep.subr.mxu0 0.0
    %317 = vmatpush1.msra.mxu0 0.0
    %318 = vmatprep.subr.mxu0 0.0
    %319 = vmatpush1.msra.mxu0 0.0
    %320 = vmatprep.subr.mxu0 0.0
    %321 = vmatpush1.msra.mxu0 0.0
    %322 = vmatprep.subr.mxu0 0.0
    %323 = vmatpush1.msra.mxu0 0.0
    %324 = vmatprep.subr.mxu0 0.0
    %325 = vmatpush1.msra.mxu0 0.0
    %326 = vmatprep.subr.mxu0 0.0
    %327 = vmatpush1.msra.mxu0 0.0
    %328 = vmatprep.subr.mxu0 0.0
    %329 = vmatpush1.msra.mxu0 0.0
    %330 = vmatprep.subr.mxu0 0.0
    %331 = vmatpush1.msra.mxu0 0.0
    %332 = vmatprep.subr.mxu0 0.0
    %333 = vmatpush1.msra.mxu0 0.0
    %334 = vmatprep.subr.mxu0 0.0
    %335 = vmatpush1.msra.mxu0 0.0
    %336 = vmatprep.subr.mxu0 0.0
    %337 = vmatpush1.msra.mxu0 0.0
    %338 = vmatprep.subr.mxu0 0.0
    %339 = vmatpush1.msra.mxu0 0.0
    %340 = vmatprep.subr.mxu0 0.0
    %341 = vmatpush1.msra.mxu0 0.0
    %342 = vmatprep.subr.mxu0 0.0
    %343 = vmatpush1.msra.mxu0 0.0
    %344 = vmatprep.subr.mxu0 0.0
    %345 = vmatpush1.msra.mxu0 0.0
    %346 = vmatprep.subr.mxu0 0.0
    %347 = vmatpush1.msra.mxu0 0.0
    %348 = vmatprep.subr.mxu0 0.0
    %349 = vmatpush1.msra.mxu0 0.0
    %350 = vmatprep.subr.mxu0 0.0
    %351 = vmatpush1.msra.mxu0 0.0
    %352 = vmatprep.subr.mxu0 0.0
    %353 = vmatpush1.msra.mxu0 0.0
    %354 = vmatprep.subr.mxu0 0.0
    %355 = vmatpush1.msra.mxu0 0.0
    %356 = vmatprep.subr.mxu0 0.0
    %357 = vmatpush1.msra.mxu0 0.0
    %358 = vmatprep.subr.mxu0 0.0
    %359 = vmatpush1.msra.mxu0 0.0
    %360 = vmatprep.subr.mxu0 0.0
    %361 = vmatpush1.msra.mxu0 0.0
    %362 = vmatprep.subr.mxu0 0.0
    %363 = vmatpush1.msra.mxu0 0.0
    %364 = vmatprep.mubr.f32.mxu0 0.0
    %365 = vmatmul.mubr.f32.gmra.mrb[0].mxu0 %v130
    %v366 = vpop.f32.mrb[0].mxu0
    %v367 = vadd.f32 0.0, %v366
    %v368 = vpop.f32.mrb[0].mxu0
    %369 = vmatprep.mubr.f32.mxu0 0.0
    %370 = vmatmul.mubr.f32.gmra.mrb[0].mxu0 %v133
    %v371 = vpop.f32.mrb[0].mxu0
    %v372 = vadd.f32 0.0, %v371
    %v373 = vpop.f32.mrb[0].mxu0
    %374 = vdwg.mxu0
    %vm375 = vcmask 130048
    %v377 = vsel %vm375, %v293, 0
    %v380 = vsel %vm375, %v294, 0
    %382 = vmatprep.subr.mxu0 0.0
    %383 = vmatpush1.msra.mxu0 %v367
    %384 = vmatprep.subr.mxu0 0.0
    %385 = vmatpush1.msra.mxu0 %v372
    %386 = vmatprep.subr.mxu0 0.0
    %387 = vmatpush1.msra.mxu0 0.0
    %388 = vmatprep.subr.mxu0 0.0
    %389 = vmatpush1.msra.mxu0 0.0
    %390 = vmatprep.subr.mxu0 0.0
    %391 = vmatpush1.msra.mxu0 0.0
    %392 = vmatprep.subr.mxu0 0.0
    %393 = vmatpush1.msra.mxu0 0.0
    %394 = vmatprep.subr.mxu0 0.0
    %395 = vmatpush1.msra.mxu0 0.0
    %396 = vmatprep.subr.mxu0 0.0
    %397 = vmatpush1.msra.mxu0 0.0
    %398 = vmatprep.subr.mxu0 0.0
    %399 = vmatpush1.msra.mxu0 0.0
    %400 = vmatprep.subr.mxu0 0.0
    %401 = vmatpush1.msra.mxu0 0.0
    %402 = vmatprep.subr.mxu0 0.0
    %403 = vmatpush1.msra.mxu0 0.0
    %404 = vmatprep.subr.mxu0 0.0
    %405 = vmatpush1.msra.mxu0 0.0
    %406 = vmatprep.subr.mxu0 0.0
    %407 = vmatpush1.msra.mxu0 0.0
    %408 = vmatprep.subr.mxu0 0.0
    %409 = vmatpush1.msra.mxu0 0.0
    %410 = vmatprep.subr.mxu0 0.0
    %411 = vmatpush1.msra.mxu0 0.0
    %412 = vmatprep.subr.mxu0 0.0
    %413 = vmatpush1.msra.mxu0 0.0
    %414 = vmatprep.subr.mxu0 0.0
    %415 = vmatpush1.msra.mxu0 0.0
    %416 = vmatprep.subr.mxu0 0.0
    %417 = vmatpush1.msra.mxu0 0.0
    %418 = vmatprep.subr.mxu0 0.0
    %419 = vmatpush1.msra.mxu0 0.0
    %420 = vmatprep.subr.mxu0 0.0
    %421 = vmatpush1.msra.mxu0 0.0
    %422 = vmatprep.subr.mxu0 0.0
    %423 = vmatpush1.msra.mxu0 0.0
    %424 = vmatprep.subr.mxu0 0.0
    %425 = vmatpush1.msra.mxu0 0.0
    %426 = vmatprep.subr.mxu0 0.0
    %427 = vmatpush1.msra.mxu0 0.0
    %428 = vmatprep.subr.mxu0 0.0
    %429 = vmatpush1.msra.mxu0 0.0
    %430 = vmatprep.subr.mxu0 0.0
    %431 = vmatpush1.msra.mxu0 0.0
    %432 = vmatprep.subr.mxu0 0.0
    %433 = vmatpush1.msra.mxu0 0.0
    %434 = vmatprep.subr.mxu0 0.0
    %435 = vmatpush1.msra.mxu0 0.0
    %436 = vmatprep.subr.mxu0 0.0
    %437 = vmatpush1.msra.mxu0 0.0
    %438 = vmatprep.subr.mxu0 0.0
    %439 = vmatpush1.msra.mxu0 0.0
    %440 = vmatprep.subr.mxu0 0.0
    %441 = vmatpush1.msra.mxu0 0.0
    %442 = vmatprep.subr.mxu0 0.0
    %443 = vmatpush1.msra.mxu0 0.0
    %444 = vmatprep.subr.mxu0 0.0
    %445 = vmatpush1.msra.mxu0 0.0
    %446 = vmatprep.mubr.f32.mxu0 0.0
    %447 = vmatmul.mubr.f32.gmra.mrb[0].mxu0 %v377
    %v448 = vpop.f32.mrb[0].mxu0
    %v449 = vadd.f32 0.0, %v448
    %v450 = vpop.f32.mrb[0].mxu0
    %451 = vmatprep.mubr.f32.mxu0 0.0
    %452 = vmatmul.mubr.f32.gmra.mrb[0].mxu0 %v380
    %v453 = vpop.f32.mrb[0].mxu0
    %v454 = vadd.f32 0.0, %v453
    %v455 = vpop.f32.mrb[0].mxu0
    %456 = vdwg.mxu0
    %v457 = vadd.f32 %v114, %v449
    %v458 = vadd.f32 %v119, %v454
    %s459 = scalar_lea.vmem %s5, 2
    %v460 = vld [vmem:[%s459] sm:$0x1]
    %s461 = scalar_lea.vmem %s5, 3
    %v462 = vld [vmem:[%s461] sm:$0x1]
    %v463 = vsel %vm128, %v457, 0.0
    %464 = vadd.xlane.f32.xlu0 %v463
    %v465 = vpop.xlane.xlu0 %464
    %v466 = vsel %vm128, %v458, 0.0
    %467 = vadd.xlane.f32.xlu0 %v466
    %v468 = vpop.xlane.xlu0 %467
    %v469 = vrcp.pop 32.0
    %v470 = vmul.f32 %v465, %v469
    %v471 = vmul.f32 %v468, %v469
    %v472 = vsub.f32 %v457, %v470
    %v473 = vsub.f32 %v458, %v471
    %v474 = vmul.f32 %v472, %v472
    %v475 = vmul.f32 %v473, %v473
    %v476 = vsel %vm128, %v474, 0.0
    %477 = vadd.xlane.f32.xlu0 %v476
    %v478 = vpop.xlane.xlu0 %477
    %v479 = vsel %vm128, %v475, 0.0
    %480 = vadd.xlane.f32.xlu0 %v479
    %v481 = vpop.xlane.xlu0 %480
    %v482 = vmul.f32 %v478, %v469
    %v483 = vmul.f32 %v481, %v469
    %v484 = vadd.f32 %v482, 1e-05
    %v485 = vadd.f32 %v483, 1e-05
    %v486 = vrsqrt.pop %v484
    %v487 = vrsqrt.pop %v485
    %v488 = vmul.f32 %v472, %v486
    %v489 = vmul.f32 %v473, %v487
    %v491 = vlaneseq
    %v492 = vshrl.u32 %v491, 7
    %v493 = vsub.s32 0, %v492
    %v494 = vrot.slane %v460, %v493
    %v496 = vmul.f32 %v488, %v494
    %v497 = vmul.f32 %v489, %v494
    %v499 = vlaneseq
    %v500 = vshrl.u32 %v499, 7
    %v501 = vsub.s32 0, %v500
    %v502 = vrot.slane %v462, %v501
    %v504 = vadd.f32 %v496, %v502
    %v505 = vadd.f32 %v497, %v502
    %s506 = scalar_lea.vmem %s4, 64
    %v507 = vld [vmem:[%s506] sm:$0xff]
    %v508 = vld [vmem:[%s506 + $0x8] sm:$0xff]
    %v509 = vld [vmem:[%s506 + $0x10] sm:$0xff]
    %v510 = vld [vmem:[%s506 + $0x18] sm:$0xff]
    %v511 = vld [vmem:[%s5] sm:$0x1]
    %v513 = vlaneseq
    %v514 = vshrl.u32 %v513, 7
    %v515 = vsub.s32 0, %v514
    %v516 = vrot.slane %v511, %v515
    %v519 = vsel %vm128, %v504, 0
    %v522 = vsel %vm128, %v505, 0
    %524 = vmatprep.subr.mxu0 0.0
    %525 = vmatpush1.msra.mxu0 %v507
    %526 = vmatprep.subr.mxu0 0.0
    %527 = vmatpush1.msra.mxu0 %v508
    %528 = vmatprep.subr.mxu0 0.0
    %529 = vmatpush1.msra.mxu0 %v509
    %530 = vmatprep.subr.mxu0 0.0
    %531 = vmatpush1.msra.mxu0 %v510
    %532 = vmatprep.subr.mxu0 0.0
    %533 = vmatpush1.msra.mxu0 0.0
    %534 = vmatprep.subr.mxu0 0.0
    %535 = vmatpush1.msra.mxu0 0.0
    %536 = vmatprep.subr.mxu0 0.0
    %537 = vmatpush1.msra.mxu0 0.0
    %538 = vmatprep.subr.mxu0 0.0
    %539 = vmatpush1.msra.mxu0 0.0
    %540 = vmatprep.subr.mxu0 0.0
    %541 = vmatpush1.msra.mxu0 0.0
    %542 = vmatprep.subr.mxu0 0.0
    %543 = vmatpush1.msra.mxu0 0.0
    %544 = vmatprep.subr.mxu0 0.0
    %545 = vmatpush1.msra.mxu0 0.0
    %546 = vmatprep.subr.mxu0 0.0
    %547 = vmatpush1.msra.mxu0 0.0
    %548 = vmatprep.subr.mxu0 0.0
    %549 = vmatpush1.msra.mxu0 0.0
    %550 = vmatprep.subr.mxu0 0.0
    %551 = vmatpush1.msra.mxu0 0.0
    %552 = vmatprep.subr.mxu0 0.0
    %553 = vmatpush1.msra.mxu0 0.0
    %554 = vmatprep.subr.mxu0 0.0
    %555 = vmatpush1.msra.mxu0 0.0
    %556 = vmatprep.subr.mxu0 0.0
    %557 = vmatpush1.msra.mxu0 0.0
    %558 = vmatprep.subr.mxu0 0.0
    %559 = vmatpush1.msra.mxu0 0.0
    %560 = vmatprep.subr.mxu0 0.0
    %561 = vmatpush1.msra.mxu0 0.0
    %562 = vmatprep.subr.mxu0 0.0
    %563 = vmatpush1.msra.mxu0 0.0
    %564 = vmatprep.subr.mxu0 0.0
    %565 = vmatpush1.msra.mxu0 0.0
    %566 = vmatprep.subr.mxu0 0.0
    %567 = vmatpush1.msra.mxu0 0.0
    %568 = vmatprep.subr.mxu0 0.0
    %569 = vmatpush1.msra.mxu0 0.0
    %570 = vmatprep.subr.mxu0 0.0
    %571 = vmatpush1.msra.mxu0 0.0
    %572 = vmatprep.subr.mxu0 0.0
    %573 = vmatpush1.msra.mxu0 0.0
    %574 = vmatprep.subr.mxu0 0.0
    %575 = vmatpush1.msra.mxu0 0.0
    %576 = vmatprep.subr.mxu0 0.0
    %577 = vmatpush1.msra.mxu0 0.0
    %578 = vmatprep.subr.mxu0 0.0
    %579 = vmatpush1.msra.mxu0 0.0
    %580 = vmatprep.subr.mxu0 0.0
    %581 = vmatpush1.msra.mxu0 0.0
    %582 = vmatprep.subr.mxu0 0.0
    %583 = vmatpush1.msra.mxu0 0.0
    %584 = vmatprep.subr.mxu0 0.0
    %585 = vmatpush1.msra.mxu0 0.0
    %586 = vmatprep.subr.mxu0 0.0
    %587 = vmatpush1.msra.mxu0 0.0
    %588 = vmatprep.mubr.f32.mxu0 0.0
    %589 = vmatmul.mubr.f32.gmra.mrb[0].mxu0 %v519
    %v590 = vpop.f32.mrb[0].mxu0
    %v591 = vadd.f32 %v516, %v590
    %v592 = vpop.f32.mrb[0].mxu0
    %593 = vmatprep.mubr.f32.mxu0 0.0
    %594 = vmatmul.mubr.f32.gmra.mrb[0].mxu0 %v522
    %v595 = vpop.f32.mrb[0].mxu0
    %v596 = vadd.f32 %v516, %v595
    %v597 = vpop.f32.mrb[0].mxu0
    %598 = vdwg.mxu0
    %v599 = vmax.f32 %v591, 0.0
    %v600 = vmax.f32 %v596, 0.0
    %s601 = scalar_lea.vmem %s4, 96
    %v602 = vld [vmem:[%s601] sm:$0xff]
    %v603 = vld [vmem:[%s601 + $0x8] sm:$0xff]
    %v604 = vld [vmem:[%s601 + $0x10] sm:$0xff]
    %v605 = vld [vmem:[%s601 + $0x18] sm:$0xff]
    %s606 = scalar_lea.vmem %s5, 1
    %v607 = vld [vmem:[%s606] sm:$0x1]
    %v609 = vlaneseq
    %v610 = vshrl.u32 %v609, 7
    %v611 = vsub.s32 0, %v610
    %v612 = vrot.slane %v607, %v611
    %v615 = vsel %vm128, %v599, 0
    %v618 = vsel %vm128, %v600, 0
    %620 = vmatprep.subr.mxu0 0.0
    %621 = vmatpush1.msra.mxu0 %v602
    %622 = vmatprep.subr.mxu0 0.0
    %623 = vmatpush1.msra.mxu0 %v603
    %624 = vmatprep.subr.mxu0 0.0
    %625 = vmatpush1.msra.mxu0 %v604
    %626 = vmatprep.subr.mxu0 0.0
    %627 = vmatpush1.msra.mxu0 %v605
    %628 = vmatprep.subr.mxu0 0.0
    %629 = vmatpush1.msra.mxu0 0.0
    %630 = vmatprep.subr.mxu0 0.0
    %631 = vmatpush1.msra.mxu0 0.0
    %632 = vmatprep.subr.mxu0 0.0
    %633 = vmatpush1.msra.mxu0 0.0
    %634 = vmatprep.subr.mxu0 0.0
    %635 = vmatpush1.msra.mxu0 0.0
    %636 = vmatprep.subr.mxu0 0.0
    %637 = vmatpush1.msra.mxu0 0.0
    %638 = vmatprep.subr.mxu0 0.0
    %639 = vmatpush1.msra.mxu0 0.0
    %640 = vmatprep.subr.mxu0 0.0
    %641 = vmatpush1.msra.mxu0 0.0
    %642 = vmatprep.subr.mxu0 0.0
    %643 = vmatpush1.msra.mxu0 0.0
    %644 = vmatprep.subr.mxu0 0.0
    %645 = vmatpush1.msra.mxu0 0.0
    %646 = vmatprep.subr.mxu0 0.0
    %647 = vmatpush1.msra.mxu0 0.0
    %648 = vmatprep.subr.mxu0 0.0
    %649 = vmatpush1.msra.mxu0 0.0
    %650 = vmatprep.subr.mxu0 0.0
    %651 = vmatpush1.msra.mxu0 0.0
    %652 = vmatprep.subr.mxu0 0.0
    %653 = vmatpush1.msra.mxu0 0.0
    %654 = vmatprep.subr.mxu0 0.0
    %655 = vmatpush1.msra.mxu0 0.0
    %656 = vmatprep.subr.mxu0 0.0
    %657 = vmatpush1.msra.mxu0 0.0
    %658 = vmatprep.subr.mxu0 0.0
    %659 = vmatpush1.msra.mxu0 0.0
    %660 = vmatprep.subr.mxu0 0.0
    %661 = vmatpush1.msra.mxu0 0.0
    %662 = vmatprep.subr.mxu0 0.0
    %663 = vmatpush1.msra.mxu0 0.0
    %664 = vmatprep.subr.mxu0 0.0
    %665 = vmatpush1.msra.mxu0 0.0
    %666 = vmatprep.subr.mxu0 0.0
    %667 = vmatpush1.msra.mxu0 0.0
    %668 = vmatprep.subr.mxu0 0.0
    %669 = vmatpush1.msra.mxu0 0.0
    %670 = vmatprep.subr.mxu0 0.0
    %671 = vmatpush1.msra.mxu0 0.0
    %672 = vmatprep.subr.mxu0 0.0
    %673 = vmatpush1.msra.mxu0 0.0
    %674 = vmatprep.subr.mxu0 0.0
    %675 = vmatpush1.msra.mxu0 0.0
    %676 = vmatprep.subr.mxu0 0.0
    %677 = vmatpush1.msra.mxu0 0.0
    %678 = vmatprep.subr.mxu0 0.0
    %679 = vmatpush1.msra.mxu0 0.0
    %680 = vmatprep.subr.mxu0 0.0
    %681 = vmatpush1.msra.mxu0 0.0
    %682 = vmatprep.subr.mxu0 0.0
    %683 = vmatpush1.msra.mxu0 0.0
    %684 = vmatprep.mubr.f32.mxu0 0.0
    %685 = vmatmul.mubr.f32.gmra.mrb[0].mxu0 %v615
    %v686 = vpop.f32.mrb[0].mxu0
    %v687 = vadd.f32 %v612, %v686
    %v688 = vpop.f32.mrb[0].mxu0
    %689 = vmatprep.mubr.f32.mxu0 0.0
    %690 = vmatmul.mubr.f32.gmra.mrb[0].mxu0 %v618
    %v691 = vpop.f32.mrb[0].mxu0
    %v692 = vadd.f32 %v612, %v691
    %v693 = vpop.f32.mrb[0].mxu0
    %694 = vdwg.mxu0
    %v695 = vadd.f32 %v504, %v687
    %v696 = vadd.f32 %v505, %v692
    %s697 = scalar_lea.vmem %s5, 4
    %v698 = vld [vmem:[%s697] sm:$0x1]
    %s699 = scalar_lea.vmem %s5, 5
    %v700 = vld [vmem:[%s699] sm:$0x1]
    %v701 = vsel %vm128, %v695, 0.0
    %702 = vadd.xlane.f32.xlu0 %v701
    %v703 = vpop.xlane.xlu0 %702
    %v704 = vsel %vm128, %v696, 0.0
    %705 = vadd.xlane.f32.xlu0 %v704
    %v706 = vpop.xlane.xlu0 %705
    %v707 = vmul.f32 %v703, %v469
    %v708 = vmul.f32 %v706, %v469
    %v709 = vsub.f32 %v695, %v707
    %v710 = vsub.f32 %v696, %v708
    %v711 = vmul.f32 %v709, %v709
    %v712 = vmul.f32 %v710, %v710
    %v713 = vsel %vm128, %v711, 0.0
    %714 = vadd.xlane.f32.xlu0 %v713
    %v715 = vpop.xlane.xlu0 %714
    %v716 = vsel %vm128, %v712, 0.0
    %717 = vadd.xlane.f32.xlu0 %v716
    %v718 = vpop.xlane.xlu0 %717
    %v719 = vmul.f32 %v715, %v469
    %v720 = vmul.f32 %v718, %v469
    %v721 = vadd.f32 %v719, 1e-05
    %v722 = vadd.f32 %v720, 1e-05
    %v723 = vrsqrt.pop %v721
    %v724 = vrsqrt.pop %v722
    %v725 = vmul.f32 %v709, %v723
    %v726 = vmul.f32 %v710, %v724
    %v728 = vlaneseq
    %v729 = vshrl.u32 %v728, 7
    %v730 = vsub.s32 0, %v729
    %v731 = vrot.slane %v698, %v730
    %v733 = vmul.f32 %v725, %v731
    %v734 = vmul.f32 %v726, %v731
    %v736 = vlaneseq
    %v737 = vshrl.u32 %v736, 7
    %v738 = vsub.s32 0, %v737
    %v739 = vrot.slane %v700, %v738
    %v741 = vadd.f32 %v733, %v739
    %v742 = vadd.f32 %v734, %v739
    %s743 = scalar_lea.vmem %s4, 128
    %v744 = vld [vmem:[%s743] sm:$0xff]
    %v745 = vld [vmem:[%s743 + $0x8] sm:$0xff]
    %v746 = vld [vmem:[%s743 + $0x10] sm:$0xff]
    %v747 = vld [vmem:[%s743 + $0x18] sm:$0xff]
    %v749 = vsel %vm128, %v741, 0
    %v752 = vsel %vm128, %v742, 0
    %754 = vmatprep.subr.mxu0 0.0
    %755 = vmatpush1.msra.mxu0 %v744
    %756 = vmatprep.subr.mxu0 0.0
    %757 = vmatpush1.msra.mxu0 %v745
    %758 = vmatprep.subr.mxu0 0.0
    %759 = vmatpush1.msra.mxu0 %v746
    %760 = vmatprep.subr.mxu0 0.0
    %761 = vmatpush1.msra.mxu0 %v747
    %762 = vmatprep.subr.mxu0 0.0
    %763 = vmatpush1.msra.mxu0 0.0
    %764 = vmatprep.subr.mxu0 0.0
    %765 = vmatpush1.msra.mxu0 0.0
    %766 = vmatprep.subr.mxu0 0.0
    %767 = vmatpush1.msra.mxu0 0.0
    %768 = vmatprep.subr.mxu0 0.0
    %769 = vmatpush1.msra.mxu0 0.0
    %770 = vmatprep.subr.mxu0 0.0
    %771 = vmatpush1.msra.mxu0 0.0
    %772 = vmatprep.subr.mxu0 0.0
    %773 = vmatpush1.msra.mxu0 0.0
    %774 = vmatprep.subr.mxu0 0.0
    %775 = vmatpush1.msra.mxu0 0.0
    %776 = vmatprep.subr.mxu0 0.0
    %777 = vmatpush1.msra.mxu0 0.0
    %778 = vmatprep.subr.mxu0 0.0
    %779 = vmatpush1.msra.mxu0 0.0
    %780 = vmatprep.subr.mxu0 0.0
    %781 = vmatpush1.msra.mxu0 0.0
    %782 = vmatprep.subr.mxu0 0.0
    %783 = vmatpush1.msra.mxu0 0.0
    %784 = vmatprep.subr.mxu0 0.0
    %785 = vmatpush1.msra.mxu0 0.0
    %786 = vmatprep.subr.mxu0 0.0
    %787 = vmatpush1.msra.mxu0 0.0
    %788 = vmatprep.subr.mxu0 0.0
    %789 = vmatpush1.msra.mxu0 0.0
    %790 = vmatprep.subr.mxu0 0.0
    %791 = vmatpush1.msra.mxu0 0.0
    %792 = vmatprep.subr.mxu0 0.0
    %793 = vmatpush1.msra.mxu0 0.0
    %794 = vmatprep.subr.mxu0 0.0
    %795 = vmatpush1.msra.mxu0 0.0
    %796 = vmatprep.subr.mxu0 0.0
    %797 = vmatpush1.msra.mxu0 0.0
    %798 = vmatprep.subr.mxu0 0.0
    %799 = vmatpush1.msra.mxu0 0.0
    %800 = vmatprep.subr.mxu0 0.0
    %801 = vmatpush1.msra.mxu0 0.0
    %802 = vmatprep.subr.mxu0 0.0
    %803 = vmatpush1.msra.mxu0 0.0
    %804 = vmatprep.subr.mxu0 0.0
    %805 = vmatpush1.msra.mxu0 0.0
    %806 = vmatprep.subr.mxu0 0.0
    %807 = vmatpush1.msra.mxu0 0.0
    %808 = vmatprep.subr.mxu0 0.0
    %809 = vmatpush1.msra.mxu0 0.0
    %810 = vmatprep.subr.mxu0 0.0
    %811 = vmatpush1.msra.mxu0 0.0
    %812 = vmatprep.subr.mxu0 0.0
    %813 = vmatpush1.msra.mxu0 0.0
    %814 = vmatprep.subr.mxu0 0.0
    %815 = vmatpush1.msra.mxu0 0.0
    %816 = vmatprep.subr.mxu0 0.0
    %817 = vmatpush1.msra.mxu0 0.0
    %818 = vmatprep.mubr.f32.mxu0 0.0
    %819 = vmatmul.mubr.f32.gmra.mrb[0].mxu0 %v749
    %v820 = vpop.f32.mrb[0].mxu0
    %v821 = vadd.f32 0.0, %v820
    %v822 = vpop.f32.mrb[0].mxu0
    %823 = vmatprep.mubr.f32.mxu0 0.0
    %824 = vmatmul.mubr.f32.gmra.mrb[0].mxu0 %v752
    %v825 = vpop.f32.mrb[0].mxu0
    %v826 = vadd.f32 0.0, %v825
    %v827 = vpop.f32.mrb[0].mxu0
    %828 = vdwg.mxu0
    %v830 = vsel %vm128, %v821, 0
    %v833 = vsel %vm128, %v826, 0
    %835 = vmatprep.subr.mxu0 0.0
    %836 = vmatpush1.xpose.msra.mxu0 %v749
    %837 = vmatprep.subr.mxu0 0.0
    %838 = vmatpush1.xpose.msra.mxu0 %v752
    %839 = vmatprep.subr.mxu0 0.0
    %840 = vmatpush1.xpose.msra.mxu0 0.0
    %841 = vmatprep.subr.mxu0 0.0
    %842 = vmatpush1.xpose.msra.mxu0 0.0
    %843 = vmatprep.subr.mxu0 0.0
    %844 = vmatpush1.xpose.msra.mxu0 0.0
    %845 = vmatprep.subr.mxu0 0.0
    %846 = vmatpush1.xpose.msra.mxu0 0.0
    %847 = vmatprep.subr.mxu0 0.0
    %848 = vmatpush1.xpose.msra.mxu0 0.0
    %849 = vmatprep.subr.mxu0 0.0
    %850 = vmatpush1.xpose.msra.mxu0 0.0
    %851 = vmatprep.subr.mxu0 0.0
    %852 = vmatpush1.xpose.msra.mxu0 0.0
    %853 = vmatprep.subr.mxu0 0.0
    %854 = vmatpush1.xpose.msra.mxu0 0.0
    %855 = vmatprep.subr.mxu0 0.0
    %856 = vmatpush1.xpose.msra.mxu0 0.0
    %857 = vmatprep.subr.mxu0 0.0
    %858 = vmatpush1.xpose.msra.mxu0 0.0
    %859 = vmatprep.subr.mxu0 0.0
    %860 = vmatpush1.xpose.msra.mxu0 0.0
    %861 = vmatprep.subr.mxu0 0.0
    %862 = vmatpush1.xpose.msra.mxu0 0.0
    %863 = vmatprep.subr.mxu0 0.0
    %864 = vmatpush1.xpose.msra.mxu0 0.0
    %865 = vmatprep.subr.mxu0 0.0
    %866 = vmatpush1.xpose.msra.mxu0 0.0
    %867 = vmatprep.subr.mxu0 0.0
    %868 = vmatpush1.xpose.msra.mxu0 0.0
    %869 = vmatprep.subr.mxu0 0.0
    %870 = vmatpush1.xpose.msra.mxu0 0.0
    %871 = vmatprep.subr.mxu0 0.0
    %872 = vmatpush1.xpose.msra.mxu0 0.0
    %873 = vmatprep.subr.mxu0 0.0
    %874 = vmatpush1.xpose.msra.mxu0 0.0
    %875 = vmatprep.subr.mxu0 0.0
    %876 = vmatpush1.xpose.msra.mxu0 0.0
    %877 = vmatprep.subr.mxu0 0.0
    %878 = vmatpush1.xpose.msra.mxu0 0.0
    %879 = vmatprep.subr.mxu0 0.0
    %880 = vmatpush1.xpose.msra.mxu0 0.0
    %881 = vmatprep.subr.mxu0 0.0
    %882 = vmatpush1.xpose.msra.mxu0 0.0
    %883 = vmatprep.subr.mxu0 0.0
    %884 = vmatpush1.xpose.msra.mxu0 0.0
    %885 = vmatprep.subr.mxu0 0.0
    %886 = vmatpush1.xpose.msra.mxu0 0.0
    %887 = vmatprep.subr.mxu0 0.0
    %888 = vmatpush1.xpose.msra.mxu0 0.0
    %889 = vmatprep.subr.mxu0 0.0
    %890 = vmatpush1.xpose.msra.mxu0 0.0
    %891 = vmatprep.subr.mxu0 0.0
    %892 = vmatpush1.xpose.msra.mxu0 0.0
    %893 = vmatprep.subr.mxu0 0.0
    %894 = vmatpush1.xpose.msra.mxu0 0.0
    %895 = vmatprep.subr.mxu0 0.0
    %896 = vmatpush1.xpose.msra.mxu0 0.0
    %897 = vmatprep.subr.mxu0 0.0
    %898 = vmatpush1.xpose.msra.mxu0 0.0
    %899 = vmatprep.mubr.f32.mxu0 0.0
    %900 = vmatmul.mubr.f32.gmra.mrb[0].mxu0 %v830
    %v901 = vpop.f32.mrb[0].mxu0
    %v902 = vadd.f32 0.0, %v901
    %v903 = vpop.f32.mrb[0].mxu0
    %904 = vmatprep.mubr.f32.mxu0 0.0
    %905 = vmatmul.mubr.f32.gmra.mrb[0].mxu0 %v833
    %v906 = vpop.f32.mrb[0].mxu0
    %v907 = vadd.f32 0.0, %v906
    %v908 = vpop.f32.mrb[0].mxu0
    %909 = vdwg.mxu0
    %v910 = vmax.f32 %v902, 0.0
    %v911 = vmax.f32 %v907, 0.0
    %v912 = vmul.f32 %v910, %v122
    %v913 = vmul.f32 %v911, %v123
    %s914 = scalar_lea.vmem %s4, 160
    %v915 = vld [vmem:[%s914] sm:$0xff]
    %v916 = vld [vmem:[%s914 + $0x8] sm:$0xff]
    %v917 = vld [vmem:[%s914 + $0x10] sm:$0xff]
    %v918 = vld [vmem:[%s914 + $0x18] sm:$0xff]
    %919 = vmatprep.subr.mxu0 0.0
    %920 = vmatpush1.msra.mxu0 %v915
    %921 = vmatprep.subr.mxu0 0.0
    %922 = vmatpush1.msra.mxu0 %v916
    %923 = vmatprep.subr.mxu0 0.0
    %924 = vmatpush1.msra.mxu0 %v917
    %925 = vmatprep.subr.mxu0 0.0
    %926 = vmatpush1.msra.mxu0 %v918
    %927 = vmatprep.subr.mxu0 0.0
    %928 = vmatpush1.msra.mxu0 0.0
    %929 = vmatprep.subr.mxu0 0.0
    %930 = vmatpush1.msra.mxu0 0.0
    %931 = vmatprep.subr.mxu0 0.0
    %932 = vmatpush1.msra.mxu0 0.0
    %933 = vmatprep.subr.mxu0 0.0
    %934 = vmatpush1.msra.mxu0 0.0
    %935 = vmatprep.subr.mxu0 0.0
    %936 = vmatpush1.msra.mxu0 0.0
    %937 = vmatprep.subr.mxu0 0.0
    %938 = vmatpush1.msra.mxu0 0.0
    %939 = vmatprep.subr.mxu0 0.0
    %940 = vmatpush1.msra.mxu0 0.0
    %941 = vmatprep.subr.mxu0 0.0
    %942 = vmatpush1.msra.mxu0 0.0
    %943 = vmatprep.subr.mxu0 0.0
    %944 = vmatpush1.msra.mxu0 0.0
    %945 = vmatprep.subr.mxu0 0.0
    %946 = vmatpush1.msra.mxu0 0.0
    %947 = vmatprep.subr.mxu0 0.0
    %948 = vmatpush1.msra.mxu0 0.0
    %949 = vmatprep.subr.mxu0 0.0
    %950 = vmatpush1.msra.mxu0 0.0
    %951 = vmatprep.subr.mxu0 0.0
    %952 = vmatpush1.msra.mxu0 0.0
    %953 = vmatprep.subr.mxu0 0.0
    %954 = vmatpush1.msra.mxu0 0.0
    %955 = vmatprep.subr.mxu0 0.0
    %956 = vmatpush1.msra.mxu0 0.0
    %957 = vmatprep.subr.mxu0 0.0
    %958 = vmatpush1.msra.mxu0 0.0
    %959 = vmatprep.subr.mxu0 0.0
    %960 = vmatpush1.msra.mxu0 0.0
    %961 = vmatprep.subr.mxu0 0.0
    %962 = vmatpush1.msra.mxu0 0.0
    %963 = vmatprep.subr.mxu0 0.0
    %964 = vmatpush1.msra.mxu0 0.0
    %965 = vmatprep.subr.mxu0 0.0
    %966 = vmatpush1.msra.mxu0 0.0
    %967 = vmatprep.subr.mxu0 0.0
    %968 = vmatpush1.msra.mxu0 0.0
    %969 = vmatprep.subr.mxu0 0.0
    %970 = vmatpush1.msra.mxu0 0.0
    %971 = vmatprep.subr.mxu0 0.0
    %972 = vmatpush1.msra.mxu0 0.0
    %973 = vmatprep.subr.mxu0 0.0
    %974 = vmatpush1.msra.mxu0 0.0
    %975 = vmatprep.subr.mxu0 0.0
    %976 = vmatpush1.msra.mxu0 0.0
    %977 = vmatprep.subr.mxu0 0.0
    %978 = vmatpush1.msra.mxu0 0.0
    %979 = vmatprep.subr.mxu0 0.0
    %980 = vmatpush1.msra.mxu0 0.0
    %981 = vmatprep.subr.mxu0 0.0
    %982 = vmatpush1.msra.mxu0 0.0
    %983 = vmatprep.mubr.f32.mxu0 0.0
    %984 = vmatmul.mubr.f32.gmra.mrb[0].mxu0 %v749
    %v985 = vpop.f32.mrb[0].mxu0
    %v986 = vadd.f32 0.0, %v985
    %v987 = vpop.f32.mrb[0].mxu0
    %988 = vmatprep.mubr.f32.mxu0 0.0
    %989 = vmatmul.mubr.f32.gmra.mrb[0].mxu0 %v752
    %v990 = vpop.f32.mrb[0].mxu0
    %v991 = vadd.f32 0.0, %v990
    %v992 = vpop.f32.mrb[0].mxu0
    %993 = vdwg.mxu0
    %v995 = vsel %vm375, %v912, 0
    %v998 = vsel %vm375, %v913, 0
    %1000 = vmatprep.subr.mxu0 0.0
    %1001 = vmatpush1.msra.mxu0 %v986
    %1002 = vmatprep.subr.mxu0 0.0
    %1003 = vmatpush1.msra.mxu0 %v991
    %1004 = vmatprep.subr.mxu0 0.0
    %1005 = vmatpush1.msra.mxu0 0.0
    %1006 = vmatprep.subr.mxu0 0.0
    %1007 = vmatpush1.msra.mxu0 0.0
    %1008 = vmatprep.subr.mxu0 0.0
    %1009 = vmatpush1.msra.mxu0 0.0
    %1010 = vmatprep.subr.mxu0 0.0
    %1011 = vmatpush1.msra.mxu0 0.0
    %1012 = vmatprep.subr.mxu0 0.0
    %1013 = vmatpush1.msra.mxu0 0.0
    %1014 = vmatprep.subr.mxu0 0.0
    %1015 = vmatpush1.msra.mxu0 0.0
    %1016 = vmatprep.subr.mxu0 0.0
    %1017 = vmatpush1.msra.mxu0 0.0
    %1018 = vmatprep.subr.mxu0 0.0
    %1019 = vmatpush1.msra.mxu0 0.0
    %1020 = vmatprep.subr.mxu0 0.0
    %1021 = vmatpush1.msra.mxu0 0.0
    %1022 = vmatprep.subr.mxu0 0.0
    %1023 = vmatpush1.msra.mxu0 0.0
    %1024 = vmatprep.subr.mxu0 0.0
    %1025 = vmatpush1.msra.mxu0 0.0
    %1026 = vmatprep.subr.mxu0 0.0
    %1027 = vmatpush1.msra.mxu0 0.0
    %1028 = vmatprep.subr.mxu0 0.0
    %1029 = vmatpush1.msra.mxu0 0.0
    %1030 = vmatprep.subr.mxu0 0.0
    %1031 = vmatpush1.msra.mxu0 0.0
    %1032 = vmatprep.subr.mxu0 0.0
    %1033 = vmatpush1.msra.mxu0 0.0
    %1034 = vmatprep.subr.mxu0 0.0
    %1035 = vmatpush1.msra.mxu0 0.0
    %1036 = vmatprep.subr.mxu0 0.0
    %1037 = vmatpush1.msra.mxu0 0.0
    %1038 = vmatprep.subr.mxu0 0.0
    %1039 = vmatpush1.msra.mxu0 0.0
    %1040 = vmatprep.subr.mxu0 0.0
    %1041 = vmatpush1.msra.mxu0 0.0
    %1042 = vmatprep.subr.mxu0 0.0
    %1043 = vmatpush1.msra.mxu0 0.0
    %1044 = vmatprep.subr.mxu0 0.0
    %1045 = vmatpush1.msra.mxu0 0.0
    %1046 = vmatprep.subr.mxu0 0.0
    %1047 = vmatpush1.msra.mxu0 0.0
    %1048 = vmatprep.subr.mxu0 0.0
    %1049 = vmatpush1.msra.mxu0 0.0
    %1050 = vmatprep.subr.mxu0 0.0
    %1051 = vmatpush1.msra.mxu0 0.0
    %1052 = vmatprep.subr.mxu0 0.0
    %1053 = vmatpush1.msra.mxu0 0.0
    %1054 = vmatprep.subr.mxu0 0.0
    %1055 = vmatpush1.msra.mxu0 0.0
    %1056 = vmatprep.subr.mxu0 0.0
    %1057 = vmatpush1.msra.mxu0 0.0
    %1058 = vmatprep.subr.mxu0 0.0
    %1059 = vmatpush1.msra.mxu0 0.0
    %1060 = vmatprep.subr.mxu0 0.0
    %1061 = vmatpush1.msra.mxu0 0.0
    %1062 = vmatprep.subr.mxu0 0.0
    %1063 = vmatpush1.msra.mxu0 0.0
    %1064 = vmatprep.mubr.f32.mxu0 0.0
    %1065 = vmatmul.mubr.f32.gmra.mrb[0].mxu0 %v995
    %v1066 = vpop.f32.mrb[0].mxu0
    %v1067 = vadd.f32 0.0, %v1066
    %v1068 = vpop.f32.mrb[0].mxu0
    %1069 = vmatprep.mubr.f32.mxu0 0.0
    %1070 = vmatmul.mubr.f32.gmra.mrb[0].mxu0 %v998
    %v1071 = vpop.f32.mrb[0].mxu0
    %v1072 = vadd.f32 0.0, %v1071
    %v1073 = vpop.f32.mrb[0].mxu0
    %1074 = vdwg.mxu0
    %v1075 = vadd.f32 %v741, %v1067
    %v1076 = vadd.f32 %v742, %v1072
    %s1077 = scalar_lea.vmem %s5, 8
    %v1078 = vld [vmem:[%s1077] sm:$0x1]
    %s1079 = scalar_lea.vmem %s5, 9
    %v1080 = vld [vmem:[%s1079] sm:$0x1]
    %v1081 = vsel %vm128, %v1075, 0.0
    %1082 = vadd.xlane.f32.xlu0 %v1081
    %v1083 = vpop.xlane.xlu0 %1082
    %v1084 = vsel %vm128, %v1076, 0.0
    %1085 = vadd.xlane.f32.xlu0 %v1084
    %v1086 = vpop.xlane.xlu0 %1085
    %v1087 = vmul.f32 %v1083, %v469
    %v1088 = vmul.f32 %v1086, %v469
    %v1089 = vsub.f32 %v1075, %v1087
    %v1090 = vsub.f32 %v1076, %v1088
    %v1091 = vmul.f32 %v1089, %v1089
    %v1092 = vmul.f32 %v1090, %v1090
    %v1093 = vsel %vm128, %v1091, 0.0
    %1094 = vadd.xlane.f32.xlu0 %v1093
    %v1095 = vpop.xlane.xlu0 %1094
    %v1096 = vsel %vm128, %v1092, 0.0
    %1097 = vadd.xlane.f32.xlu0 %v1096
    %v1098 = vpop.xlane.xlu0 %1097
    %v1099 = vmul.f32 %v1095, %v469
    %v1100 = vmul.f32 %v1098, %v469
    %v1101 = vadd.f32 %v1099, 1e-05
    %v1102 = vadd.f32 %v1100, 1e-05
    %v1103 = vrsqrt.pop %v1101
    %v1104 = vrsqrt.pop %v1102
    %v1105 = vmul.f32 %v1089, %v1103
    %v1106 = vmul.f32 %v1090, %v1104
    %v1108 = vlaneseq
    %v1109 = vshrl.u32 %v1108, 7
    %v1110 = vsub.s32 0, %v1109
    %v1111 = vrot.slane %v1078, %v1110
    %v1113 = vmul.f32 %v1105, %v1111
    %v1114 = vmul.f32 %v1106, %v1111
    %v1116 = vlaneseq
    %v1117 = vshrl.u32 %v1116, 7
    %v1118 = vsub.s32 0, %v1117
    %v1119 = vrot.slane %v1080, %v1118
    %v1121 = vadd.f32 %v1113, %v1119
    %v1122 = vadd.f32 %v1114, %v1119
    %s1123 = scalar_lea.vmem %s4, 192
    %v1124 = vld [vmem:[%s1123] sm:$0xff]
    %v1125 = vld [vmem:[%s1123 + $0x8] sm:$0xff]
    %v1126 = vld [vmem:[%s1123 + $0x10] sm:$0xff]
    %v1127 = vld [vmem:[%s1123 + $0x18] sm:$0xff]
    %s1128 = scalar_lea.vmem %s5, 6
    %v1129 = vld [vmem:[%s1128] sm:$0x1]
    %v1131 = vlaneseq
    %v1132 = vshrl.u32 %v1131, 7
    %v1133 = vsub.s32 0, %v1132
    %v1134 = vrot.slane %v1129, %v1133
    %v1137 = vsel %vm128, %v1121, 0
    %v1140 = vsel %vm128, %v1122, 0
    %1142 = vmatprep.subr.mxu0 0.0
    %1143 = vmatpush1.msra.mxu0 %v1124
    %1144 = vmatprep.subr.mxu0 0.0
    %1145 = vmatpush1.msra.mxu0 %v1125
    %1146 = vmatprep.subr.mxu0 0.0
    %1147 = vmatpush1.msra.mxu0 %v1126
    %1148 = vmatprep.subr.mxu0 0.0
    %1149 = vmatpush1.msra.mxu0 %v1127
    %1150 = vmatprep.subr.mxu0 0.0
    %1151 = vmatpush1.msra.mxu0 0.0
    %1152 = vmatprep.subr.mxu0 0.0
    %1153 = vmatpush1.msra.mxu0 0.0
    %1154 = vmatprep.subr.mxu0 0.0
    %1155 = vmatpush1.msra.mxu0 0.0
    %1156 = vmatprep.subr.mxu0 0.0
    %1157 = vmatpush1.msra.mxu0 0.0
    %1158 = vmatprep.subr.mxu0 0.0
    %1159 = vmatpush1.msra.mxu0 0.0
    %1160 = vmatprep.subr.mxu0 0.0
    %1161 = vmatpush1.msra.mxu0 0.0
    %1162 = vmatprep.subr.mxu0 0.0
    %1163 = vmatpush1.msra.mxu0 0.0
    %1164 = vmatprep.subr.mxu0 0.0
    %1165 = vmatpush1.msra.mxu0 0.0
    %1166 = vmatprep.subr.mxu0 0.0
    %1167 = vmatpush1.msra.mxu0 0.0
    %1168 = vmatprep.subr.mxu0 0.0
    %1169 = vmatpush1.msra.mxu0 0.0
    %1170 = vmatprep.subr.mxu0 0.0
    %1171 = vmatpush1.msra.mxu0 0.0
    %1172 = vmatprep.subr.mxu0 0.0
    %1173 = vmatpush1.msra.mxu0 0.0
    %1174 = vmatprep.subr.mxu0 0.0
    %1175 = vmatpush1.msra.mxu0 0.0
    %1176 = vmatprep.subr.mxu0 0.0
    %1177 = vmatpush1.msra.mxu0 0.0
    %1178 = vmatprep.subr.mxu0 0.0
    %1179 = vmatpush1.msra.mxu0 0.0
    %1180 = vmatprep.subr.mxu0 0.0
    %1181 = vmatpush1.msra.mxu0 0.0
    %1182 = vmatprep.subr.mxu0 0.0
    %1183 = vmatpush1.msra.mxu0 0.0
    %1184 = vmatprep.subr.mxu0 0.0
    %1185 = vmatpush1.msra.mxu0 0.0
    %1186 = vmatprep.subr.mxu0 0.0
    %1187 = vmatpush1.msra.mxu0 0.0
    %1188 = vmatprep.subr.mxu0 0.0
    %1189 = vmatpush1.msra.mxu0 0.0
    %1190 = vmatprep.subr.mxu0 0.0
    %1191 = vmatpush1.msra.mxu0 0.0
    %1192 = vmatprep.subr.mxu0 0.0
    %1193 = vmatpush1.msra.mxu0 0.0
    %1194 = vmatprep.subr.mxu0 0.0
    %1195 = vmatpush1.msra.mxu0 0.0
    %1196 = vmatprep.subr.mxu0 0.0
    %1197 = vmatpush1.msra.mxu0 0.0
    %1198 = vmatprep.subr.mxu0 0.0
    %1199 = vmatpush1.msra.mxu0 0.0
    %1200 = vmatprep.subr.mxu0 0.0
    %1201 = vmatpush1.msra.mxu0 0.0
    %1202 = vmatprep.subr.mxu0 0.0
    %1203 = vmatpush1.msra.mxu0 0.0
    %1204 = vmatprep.subr.mxu0 0.0
    %1205 = vmatpush1.msra.mxu0 0.0
    %1206 = vmatprep.mubr.f32.mxu0 0.0
    %1207 = vmatmul.mubr.f32.gmra.mrb[0].mxu0 %v1137
    %v1208 = vpop.f32.mrb[0].mxu0
    %v1209 = vadd.f32 %v1134, %v1208
    %v1210 = vpop.f32.mrb[0].mxu0
    %1211 = vmatprep.mubr.f32.mxu0 0.0
    %1212 = vmatmul.mubr.f32.gmra.mrb[0].mxu0 %v1140
    %v1213 = vpop.f32.mrb[0].mxu0
    %v1214 = vadd.f32 %v1134, %v1213
    %v1215 = vpop.f32.mrb[0].mxu0
    %1216 = vdwg.mxu0
    %v1217 = vmax.f32 %v1209, 0.0
    %v1218 = vmax.f32 %v1214, 0.0
    %s1219 = scalar_lea.vmem %s4, 224
    %v1220 = vld [vmem:[%s1219] sm:$0xff]
    %v1221 = vld [vmem:[%s1219 + $0x8] sm:$0xff]
    %v1222 = vld [vmem:[%s1219 + $0x10] sm:$0xff]
    %v1223 = vld [vmem:[%s1219 + $0x18] sm:$0xff]
    %s1224 = scalar_lea.vmem %s5, 7
    %v1225 = vld [vmem:[%s1224] sm:$0x1]
    %v1227 = vlaneseq
    %v1228 = vshrl.u32 %v1227, 7
    %v1229 = vsub.s32 0, %v1228
    %v1230 = vrot.slane %v1225, %v1229
    %v1233 = vsel %vm128, %v1217, 0
    %v1236 = vsel %vm128, %v1218, 0
    %1238 = vmatprep.subr.mxu0 0.0
    %1239 = vmatpush1.msra.mxu0 %v1220
    %1240 = vmatprep.subr.mxu0 0.0
    %1241 = vmatpush1.msra.mxu0 %v1221
    %1242 = vmatprep.subr.mxu0 0.0
    %1243 = vmatpush1.msra.mxu0 %v1222
    %1244 = vmatprep.subr.mxu0 0.0
    %1245 = vmatpush1.msra.mxu0 %v1223
    %1246 = vmatprep.subr.mxu0 0.0
    %1247 = vmatpush1.msra.mxu0 0.0
    %1248 = vmatprep.subr.mxu0 0.0
    %1249 = vmatpush1.msra.mxu0 0.0
    %1250 = vmatprep.subr.mxu0 0.0
    %1251 = vmatpush1.msra.mxu0 0.0
    %1252 = vmatprep.subr.mxu0 0.0
    %1253 = vmatpush1.msra.mxu0 0.0
    %1254 = vmatprep.subr.mxu0 0.0
    %1255 = vmatpush1.msra.mxu0 0.0
    %1256 = vmatprep.subr.mxu0 0.0
    %1257 = vmatpush1.msra.mxu0 0.0
    %1258 = vmatprep.subr.mxu0 0.0
    %1259 = vmatpush1.msra.mxu0 0.0
    %1260 = vmatprep.subr.mxu0 0.0
    %1261 = vmatpush1.msra.mxu0 0.0
    %1262 = vmatprep.subr.mxu0 0.0
    %1263 = vmatpush1.msra.mxu0 0.0
    %1264 = vmatprep.subr.mxu0 0.0
    %1265 = vmatpush1.msra.mxu0 0.0
    %1266 = vmatprep.subr.mxu0 0.0
    %1267 = vmatpush1.msra.mxu0 0.0
    %1268 = vmatprep.subr.mxu0 0.0
    %1269 = vmatpush1.msra.mxu0 0.0
    %1270 = vmatprep.subr.mxu0 0.0
    %1271 = vmatpush1.msra.mxu0 0.0
    %1272 = vmatprep.subr.mxu0 0.0
    %1273 = vmatpush1.msra.mxu0 0.0
    %1274 = vmatprep.subr.mxu0 0.0
    %1275 = vmatpush1.msra.mxu0 0.0
    %1276 = vmatprep.subr.mxu0 0.0
    %1277 = vmatpush1.msra.mxu0 0.0
    %1278 = vmatprep.subr.mxu0 0.0
    %1279 = vmatpush1.msra.mxu0 0.0
    %1280 = vmatprep.subr.mxu0 0.0
    %1281 = vmatpush1.msra.mxu0 0.0
    %1282 = vmatprep.subr.mxu0 0.0
    %1283 = vmatpush1.msra.mxu0 0.0
    %1284 = vmatprep.subr.mxu0 0.0
    %1285 = vmatpush1.msra.mxu0 0.0
    %1286 = vmatprep.subr.mxu0 0.0
    %1287 = vmatpush1.msra.mxu0 0.0
    %1288 = vmatprep.subr.mxu0 0.0
    %1289 = vmatpush1.msra.mxu0 0.0
    %1290 = vmatprep.subr.mxu0 0.0
    %1291 = vmatpush1.msra.mxu0 0.0
    %1292 = vmatprep.subr.mxu0 0.0
    %1293 = vmatpush1.msra.mxu0 0.0
    %1294 = vmatprep.subr.mxu0 0.0
    %1295 = vmatpush1.msra.mxu0 0.0
    %1296 = vmatprep.subr.mxu0 0.0
    %1297 = vmatpush1.msra.mxu0 0.0
    %1298 = vmatprep.subr.mxu0 0.0
    %1299 = vmatpush1.msra.mxu0 0.0
    %1300 = vmatprep.subr.mxu0 0.0
    %1301 = vmatpush1.msra.mxu0 0.0
    %1302 = vmatprep.mubr.f32.mxu0 0.0
    %1303 = vmatmul.mubr.f32.gmra.mrb[0].mxu0 %v1233
    %v1304 = vpop.f32.mrb[0].mxu0
    %v1305 = vadd.f32 %v1230, %v1304
    %v1306 = vpop.f32.mrb[0].mxu0
    %1307 = vmatprep.mubr.f32.mxu0 0.0
    %1308 = vmatmul.mubr.f32.gmra.mrb[0].mxu0 %v1236
    %v1309 = vpop.f32.mrb[0].mxu0
    %v1310 = vadd.f32 %v1230, %v1309
    %v1311 = vpop.f32.mrb[0].mxu0
    %1312 = vdwg.mxu0
    %v1313 = vadd.f32 %v1121, %v1305
    %v1314 = vadd.f32 %v1122, %v1310
    %s1315 = scalar_lea.vmem %s5, 10
    %v1316 = vld [vmem:[%s1315] sm:$0x1]
    %s1317 = scalar_lea.vmem %s5, 11
    %v1318 = vld [vmem:[%s1317] sm:$0x1]
    %v1319 = vsel %vm128, %v1313, 0.0
    %1320 = vadd.xlane.f32.xlu0 %v1319
    %v1321 = vpop.xlane.xlu0 %1320
    %v1322 = vsel %vm128, %v1314, 0.0
    %1323 = vadd.xlane.f32.xlu0 %v1322
    %v1324 = vpop.xlane.xlu0 %1323
    %v1325 = vmul.f32 %v1321, %v469
    %v1326 = vmul.f32 %v1324, %v469
    %v1327 = vsub.f32 %v1313, %v1325
    %v1328 = vsub.f32 %v1314, %v1326
    %v1329 = vmul.f32 %v1327, %v1327
    %v1330 = vmul.f32 %v1328, %v1328
    %v1331 = vsel %vm128, %v1329, 0.0
    %1332 = vadd.xlane.f32.xlu0 %v1331
    %v1333 = vpop.xlane.xlu0 %1332
    %v1334 = vsel %vm128, %v1330, 0.0
    %1335 = vadd.xlane.f32.xlu0 %v1334
    %v1336 = vpop.xlane.xlu0 %1335
    %v1337 = vmul.f32 %v1333, %v469
    %v1338 = vmul.f32 %v1336, %v469
    %v1339 = vadd.f32 %v1337, 1e-05
    %v1340 = vadd.f32 %v1338, 1e-05
    %v1341 = vrsqrt.pop %v1339
    %v1342 = vrsqrt.pop %v1340
    %v1343 = vmul.f32 %v1327, %v1341
    %v1344 = vmul.f32 %v1328, %v1342
    %v1346 = vlaneseq
    %v1347 = vshrl.u32 %v1346, 7
    %v1348 = vsub.s32 0, %v1347
    %v1349 = vrot.slane %v1316, %v1348
    %v1351 = vmul.f32 %v1343, %v1349
    %v1352 = vmul.f32 %v1344, %v1349
    %v1354 = vlaneseq
    %v1355 = vshrl.u32 %v1354, 7
    %v1356 = vsub.s32 0, %v1355
    %v1357 = vrot.slane %v1318, %v1356
    %v1359 = vadd.f32 %v1351, %v1357
    %v1360 = vadd.f32 %v1352, %v1357
    %v1361 = vlaneseq
    %v1362 = vshrl.u32 %v1361, 7
    %v1363 = vlaneseq
    %v1364 = vand.u32 %v1363, 127
    %v1365 = vmul.u32 %v1362, 2
    %vm1366 = vcmp.eq.s32.totalorder %v1364, %v1365
    %v1367 = vsel %vm1366, 1.0, 0.0
    %v1369 = vsel %vm375, %v1367, 0
    %1371 = vmatprep.subr.mxu0 0.0
    %1372 = vmatpush1.msra.mxu0 %v1359
    %1373 = vmatprep.subr.mxu0 0.0
    %1374 = vmatpush1.msra.mxu0 %v1360
    %1375 = vmatprep.subr.mxu0 0.0
    %1376 = vmatpush1.msra.mxu0 0.0
    %1377 = vmatprep.subr.mxu0 0.0
    %1378 = vmatpush1.msra.mxu0 0.0
    %1379 = vmatprep.subr.mxu0 0.0
    %1380 = vmatpush1.msra.mxu0 0.0
    %1381 = vmatprep.subr.mxu0 0.0
    %1382 = vmatpush1.msra.mxu0 0.0
    %1383 = vmatprep.subr.mxu0 0.0
    %1384 = vmatpush1.msra.mxu0 0.0
    %1385 = vmatprep.subr.mxu0 0.0
    %1386 = vmatpush1.msra.mxu0 0.0
    %1387 = vmatprep.subr.mxu0 0.0
    %1388 = vmatpush1.msra.mxu0 0.0
    %1389 = vmatprep.subr.mxu0 0.0
    %1390 = vmatpush1.msra.mxu0 0.0
    %1391 = vmatprep.subr.mxu0 0.0
    %1392 = vmatpush1.msra.mxu0 0.0
    %1393 = vmatprep.subr.mxu0 0.0
    %1394 = vmatpush1.msra.mxu0 0.0
    %1395 = vmatprep.subr.mxu0 0.0
    %1396 = vmatpush1.msra.mxu0 0.0
    %1397 = vmatprep.subr.mxu0 0.0
    %1398 = vmatpush1.msra.mxu0 0.0
    %1399 = vmatprep.subr.mxu0 0.0
    %1400 = vmatpush1.msra.mxu0 0.0
    %1401 = vmatprep.subr.mxu0 0.0
    %1402 = vmatpush1.msra.mxu0 0.0
    %1403 = vmatprep.subr.mxu0 0.0
    %1404 = vmatpush1.msra.mxu0 0.0
    %1405 = vmatprep.subr.mxu0 0.0
    %1406 = vmatpush1.msra.mxu0 0.0
    %1407 = vmatprep.subr.mxu0 0.0
    %1408 = vmatpush1.msra.mxu0 0.0
    %1409 = vmatprep.subr.mxu0 0.0
    %1410 = vmatpush1.msra.mxu0 0.0
    %1411 = vmatprep.subr.mxu0 0.0
    %1412 = vmatpush1.msra.mxu0 0.0
    %1413 = vmatprep.subr.mxu0 0.0
    %1414 = vmatpush1.msra.mxu0 0.0
    %1415 = vmatprep.subr.mxu0 0.0
    %1416 = vmatpush1.msra.mxu0 0.0
    %1417 = vmatprep.subr.mxu0 0.0
    %1418 = vmatpush1.msra.mxu0 0.0
    %1419 = vmatprep.subr.mxu0 0.0
    %1420 = vmatpush1.msra.mxu0 0.0
    %1421 = vmatprep.subr.mxu0 0.0
    %1422 = vmatpush1.msra.mxu0 0.0
    %1423 = vmatprep.subr.mxu0 0.0
    %1424 = vmatpush1.msra.mxu0 0.0
    %1425 = vmatprep.subr.mxu0 0.0
    %1426 = vmatpush1.msra.mxu0 0.0
    %1427 = vmatprep.subr.mxu0 0.0
    %1428 = vmatpush1.msra.mxu0 0.0
    %1429 = vmatprep.subr.mxu0 0.0
    %1430 = vmatpush1.msra.mxu0 0.0
    %1431 = vmatprep.subr.mxu0 0.0
    %1432 = vmatpush1.msra.mxu0 0.0
    %1433 = vmatprep.subr.mxu0 0.0
    %1434 = vmatpush1.msra.mxu0 0.0
    %1435 = vmatprep.mubr.f32.mxu0 0.0
    %1436 = vmatmul.mubr.f32.gmra.mrb[0].mxu0 %v1369
    %v1437 = vpop.f32.mrb[0].mxu0
    %v1438 = vadd.f32 0.0, %v1437
    %v1439 = vpop.f32.mrb[0].mxu0
    %1440 = vdwg.mxu0
    %v1441 = vld [vmem:[%s6] sm:$0xff]
    %v1442 = vld [vmem:[%s6 + $0x8] sm:$0xff]
    %v1443 = vld [vmem:[%s6 + $0x10] sm:$0xff]
    %v1444 = vld [vmem:[%s6 + $0x18] sm:$0xff]
    %v1445 = vld [vmem:[%s7] sm:$0x1]
    %v1447 = vlaneseq
    %v1448 = vshrl.u32 %v1447, 7
    %v1449 = vsub.s32 0, %v1448
    %v1450 = vrot.slane %v1445, %v1449
    %v1453 = vsel %vm128, %v1438, 0
    %1455 = vmatprep.subr.mxu0 0.0
    %1456 = vmatpush1.msra.mxu0 %v1441
    %1457 = vmatprep.subr.mxu0 0.0
    %1458 = vmatpush1.msra.mxu0 %v1442
    %1459 = vmatprep.subr.mxu0 0.0
    %1460 = vmatpush1.msra.mxu0 %v1443
    %1461 = vmatprep.subr.mxu0 0.0
    %1462 = vmatpush1.msra.mxu0 %v1444
    %1463 = vmatprep.subr.mxu0 0.0
    %1464 = vmatpush1.msra.mxu0 0.0
    %1465 = vmatprep.subr.mxu0 0.0
    %1466 = vmatpush1.msra.mxu0 0.0
    %1467 = vmatprep.subr.mxu0 0.0
    %1468 = vmatpush1.msra.mxu0 0.0
    %1469 = vmatprep.subr.mxu0 0.0
    %1470 = vmatpush1.msra.mxu0 0.0
    %1471 = vmatprep.subr.mxu0 0.0
    %1472 = vmatpush1.msra.mxu0 0.0
    %1473 = vmatprep.subr.mxu0 0.0
    %1474 = vmatpush1.msra.mxu0 0.0
    %1475 = vmatprep.subr.mxu0 0.0
    %1476 = vmatpush1.msra.mxu0 0.0
    %1477 = vmatprep.subr.mxu0 0.0
    %1478 = vmatpush1.msra.mxu0 0.0
    %1479 = vmatprep.subr.mxu0 0.0
    %1480 = vmatpush1.msra.mxu0 0.0
    %1481 = vmatprep.subr.mxu0 0.0
    %1482 = vmatpush1.msra.mxu0 0.0
    %1483 = vmatprep.subr.mxu0 0.0
    %1484 = vmatpush1.msra.mxu0 0.0
    %1485 = vmatprep.subr.mxu0 0.0
    %1486 = vmatpush1.msra.mxu0 0.0
    %1487 = vmatprep.subr.mxu0 0.0
    %1488 = vmatpush1.msra.mxu0 0.0
    %1489 = vmatprep.subr.mxu0 0.0
    %1490 = vmatpush1.msra.mxu0 0.0
    %1491 = vmatprep.subr.mxu0 0.0
    %1492 = vmatpush1.msra.mxu0 0.0
    %1493 = vmatprep.subr.mxu0 0.0
    %1494 = vmatpush1.msra.mxu0 0.0
    %1495 = vmatprep.subr.mxu0 0.0
    %1496 = vmatpush1.msra.mxu0 0.0
    %1497 = vmatprep.subr.mxu0 0.0
    %1498 = vmatpush1.msra.mxu0 0.0
    %1499 = vmatprep.subr.mxu0 0.0
    %1500 = vmatpush1.msra.mxu0 0.0
    %1501 = vmatprep.subr.mxu0 0.0
    %1502 = vmatpush1.msra.mxu0 0.0
    %1503 = vmatprep.subr.mxu0 0.0
    %1504 = vmatpush1.msra.mxu0 0.0
    %1505 = vmatprep.subr.mxu0 0.0
    %1506 = vmatpush1.msra.mxu0 0.0
    %1507 = vmatprep.subr.mxu0 0.0
    %1508 = vmatpush1.msra.mxu0 0.0
    %1509 = vmatprep.subr.mxu0 0.0
    %1510 = vmatpush1.msra.mxu0 0.0
    %1511 = vmatprep.subr.mxu0 0.0
    %1512 = vmatpush1.msra.mxu0 0.0
    %1513 = vmatprep.subr.mxu0 0.0
    %1514 = vmatpush1.msra.mxu0 0.0
    %1515 = vmatprep.subr.mxu0 0.0
    %1516 = vmatpush1.msra.mxu0 0.0
    %1517 = vmatprep.subr.mxu0 0.0
    %1518 = vmatpush1.msra.mxu0 0.0
    %1519 = vmatprep.mubr.f32.mxu0 0.0
    %1520 = vmatmul.mubr.f32.gmra.mrb[0].mxu0 %v1453
    %v1521 = vpop.f32.mrb[0].mxu0
    %v1522 = vadd.f32 %v1450, %v1521
    %v1523 = vpop.f32.mrb[0].mxu0
    %1524 = vdwg.mxu0
    %1525 = vst [vmem:[#allocation2] sm:$0xff] %v1522
    // Predicated region
    $region34: #{forward.1} parent=1 // pred_check
      _
    $region35: #{forward.1} parent=1 // pred_check_branch
      %1527 = sbr.rel (0) target = $region37
    $region36: #{forward.1} parent=1 // pred_region
      %s1529 = ssub.s32 128, 128
      %1530 = vsyncadd [#allocation3], %s1529
      %s1532 = sshll.u32 [#allocation2], 4
      %s1533 = int_to_ptr.vmem [resolvable:$true] %s1532
      %1535 = dma.vmem_to_hbm [thread:$0]  %s1533, 128, %s8, [#allocation3]
    $region37: #{forward.1} parent=1 // pred_fallthru
      _
    // Predicated region
    $region38: #{forward.1} parent=1 // pred_check
      _
    $region39: #{forward.1} parent=1 // pred_check_branch
      %1537 = sbr.rel (0) target = $region41
    $region40: #{forward.1} parent=1 // pred_region
      %1538 = dma.done [#allocation3], 128
    $region41: #{forward.1} parent=1 // pred_fallthru
      _
    %1539 = vsyncpa [#allocation3], 1

</llo_original>
